<compile_context>
chip_gen: v6e
topology: v6e:2x2x1
jax: 0.10.0
libtpu: 0.0.40
codegen_flags: <defaults>
</compile_context>

<pallas_src>
import functools

import jax
import jax.numpy as jnp
from jax.experimental import pallas as pl
from jax.experimental.pallas import tpu as pltpu


# ---------------------------------------------------------------------------
# In-kernel helpers
# ---------------------------------------------------------------------------
def _fill_padded_rows(pad_ref, rows, *, H):
    """Write `rows` (N, H, W*C) into pad_ref (N, H+2, W*C); zero only the halo.

    Only the two border rows are zero-filled (halo-only zeroing); the interior
    is written once with a lane-aligned, full-lane-width store.
    """
    N, _, wc = pad_ref.shape
    pad_ref[:, 0:1, :] = jnp.zeros((N, 1, wc), jnp.float32)
    pad_ref[:, H + 1:H + 2, :] = jnp.zeros((N, 1, wc), jnp.float32)
    pad_ref[:, 1:H + 1, :] = rows


def _conv_bn_relu_layer(pad_ref, w_ref, r_ref, g_row, b_row, *, H, eps, nhw):
    """One (conv3x3 SAME -> BN(train batch stats) -> ReLU) layer in VMEM.

    pad_ref : (N, H+2, W*Cin)  row-image scratch with zero top/bottom rows
    w_ref   : (3, W*Cin, W*Cout) banded (row-Toeplitz) conv weights per kh
    r_ref   : (W*Cout, W*Cout)  channel-group sum/broadcast 0/1 matrix
    g_row   : (1, W*Cout)       gamma tiled over w
    b_row   : (1, W*Cout)       beta tiled over w
    returns : (N*H, W*Cout)     activations, already in the output layout
    """
    N = pad_ref.shape[0]
    kin = pad_ref.shape[-1]          # W*Cin
    nco = w_ref.shape[-1]            # W*Cout

    # 3x3 conv == 3 dense MXU matmuls (one per row tap); the column taps and
    # SAME padding along w are folded into the banded weight matrices.
    acc = jnp.zeros((N * H, nco), jnp.float32)
    for kh in range(3):
        a_kh = pad_ref[:, kh:kh + H, :].reshape(N * H, kin)
        acc = acc + jnp.dot(a_kh, w_ref[kh],
                            preferred_element_type=jnp.float32)

    # Train-mode BatchNorm, two-pass variance.  r_ref sums each channel's W
    # lane-groups and broadcasts the per-channel result back to every group
    # in one tiny matmul, so no sub-lane reshapes are needed.
    s1 = jnp.sum(acc, axis=0, keepdims=True)                    # (1, W*Cout)
    mean_row = jnp.dot(s1, r_ref[...],
                       preferred_element_type=jnp.float32) / nhw
    cen = acc - mean_row
    s2 = jnp.sum(cen * cen, axis=0, keepdims=True)              # (1, W*Cout)
    var_row = jnp.dot(s2, r_ref[...],
                      preferred_element_type=jnp.float32) / nhw
    scale_row = g_row * jax.lax.rsqrt(var_row + eps)
    return jnp.maximum(cen * scale_row + b_row, 0.0)


def _conv_block_kernel(x_ref, w1_ref, g1_ref, b1_ref, w2_ref, g2_ref, b2_ref,
                       r_ref, out_ref, pad1_ref, pad2_ref, *,
                       H, W, Cout, eps):
    N = x_ref.shape[0]
    nhw = float(N * H * W)

    # ---- layer 1 ----
    _fill_padded_rows(pad1_ref, x_ref[...], H=H)
    a1 = _conv_bn_relu_layer(pad1_ref, w1_ref, r_ref,
                             g1_ref[...], b1_ref[...],
                             H=H, eps=eps, nhw=nhw)             # (N*H, W*Cout)

    # ---- layer 2 (intermediate never leaves VMEM) ----
    _fill_padded_rows(pad2_ref, a1.reshape(N, H, W * Cout), H=H)
    a2 = _conv_bn_relu_layer(pad2_ref, w2_ref, r_ref,
                             g2_ref[...], b2_ref[...],
                             H=H, eps=eps, nhw=nhw)             # (N*H, W*Cout)

    # Single lane-dense writeback (last dim = W*Cout = 128 at the test shape).
    out_ref[...] = a2


# ---------------------------------------------------------------------------
# Wrapper-side (one-time) weight / constant preparation
# ---------------------------------------------------------------------------
def _banded_conv_weights(w_hwio, W):
    """(3,3,Ci,Co) HWIO conv weights -> (3, W*Ci, W*Co) row-Toeplitz bands.

    bands[kh, wi*Ci + ci, w*Co + co] = w[kh, wi - w + 1, ci, co]
    whenever wi = w + kw - 1 lies inside the image; out-of-range column taps
    (the SAME padding along w) simply have no band entry.
    """
    _, _, Ci, Co = w_hwio.shape
    w = w_hwio.astype(jnp.float32)
    bands = jnp.zeros((3, W * Ci, W * Co), jnp.float32)
    for kw in range(3):
        for wo in range(W):
            wi = wo + kw - 1
            if 0 <= wi < W:
                bands = bands.at[:, wi * Ci:(wi + 1) * Ci,
                                 wo * Co:(wo + 1) * Co].set(w[:, kw])
    return bands


def _channel_group_matrix(W, Co):
    """(W*Co, W*Co) 0/1 matrix: sums a (1, W*Co) row over each channel's W
    lane groups and broadcasts the per-channel result back to every group."""
    idx = jnp.arange(W * Co)
    return (idx[:, None] % Co == idx[None, :] % Co).astype(jnp.float32)


def conv_block_forward(x_nchw, params, eps=1e-5):
    (w1, g1, b1), (w2, g2, b2) = params
    x = jnp.transpose(x_nchw, (0, 2, 3, 1)).astype(jnp.float32)  # NCHW -> NHWC
    N, H, W, Cin = x.shape
    Cout = w1.shape[-1]
    x_rows = x.reshape(N, H, W * Cin)          # lane-flattened row-images

    wk1 = _banded_conv_weights(w1, W)          # (3, W*Cin,  W*Cout)
    wk2 = _banded_conv_weights(w2, W)          # (3, W*Cout, W*Cout)
    r = _channel_group_matrix(W, Cout)         # (W*Cout, W*Cout)
    g1r = jnp.tile(g1.astype(jnp.float32), W).reshape(1, W * Cout)
    b1r = jnp.tile(b1.astype(jnp.float32), W).reshape(1, W * Cout)
    g2r = jnp.tile(g2.astype(jnp.float32), W).reshape(1, W * Cout)
    b2r = jnp.tile(b2.astype(jnp.float32), W).reshape(1, W * Cout)

    # Explicit VMEM budget: double-buffered operands + output + pad scratch,
    # plus headroom for compiler-internal scratch.
    operand_bytes = 4 * (x_rows.size + wk1.size + wk2.size + r.size
                         + g1r.size + b1r.size + g2r.size + b2r.size
                         + N * H * W * Cout)
    scratch_bytes = 4 * N * (H + 2) * W * (Cin + Cout)
    vmem_limit = int(min(96 * 2 ** 20,
                         max(4 * 2 ** 20,
                             2 * operand_bytes + scratch_bytes + (2 << 20))))

    out2d = pl.pallas_call(
        functools.partial(_conv_block_kernel, H=H, W=W, Cout=Cout, eps=eps),
        out_shape=jax.ShapeDtypeStruct((N * H, W * Cout), jnp.float32),
        grid_spec=pltpu.PrefetchScalarGridSpec(
            num_scalar_prefetch=0,
            # Whole (tiny) problem resident in one step.  Production: re-tile
            # over batch/row blocks with partial BN sums so this axis can be
            # "parallel" (v7x megacore) and VMEM stays bounded.
            grid=(1,),
            in_specs=[
                pl.BlockSpec((N, H, W * Cin), lambda i: (0, 0, 0)),
                pl.BlockSpec((3, W * Cin, W * Cout), lambda i: (0, 0, 0)),
                pl.BlockSpec((1, W * Cout), lambda i: (0, 0)),
                pl.BlockSpec((1, W * Cout), lambda i: (0, 0)),
                pl.BlockSpec((3, W * Cout, W * Cout), lambda i: (0, 0, 0)),
                pl.BlockSpec((1, W * Cout), lambda i: (0, 0)),
                pl.BlockSpec((1, W * Cout), lambda i: (0, 0)),
                pl.BlockSpec((W * Cout, W * Cout), lambda i: (0, 0)),
            ],
            out_specs=pl.BlockSpec((N * H, W * Cout), lambda i: (0, 0)),
            scratch_shapes=[
                pltpu.VMEM((N, H + 2, W * Cin), jnp.float32),   # pad rows, L1
                pltpu.VMEM((N, H + 2, W * Cout), jnp.float32),  # pad rows, L2
            ],
        ),
        compiler_params=pltpu.CompilerParams(
            dimension_semantics=("arbitrary",),
            vmem_limit_bytes=vmem_limit,
        ),
    )(x_rows, wk1, g1r, b1r, wk2, g2r, b2r, r)

    y = out2d.reshape(N, H, W, Cout)
    return jnp.transpose(y, (0, 3, 1, 2))                       # NHWC -> NCHW


# ---------------------------------------------------------------------------
# Pure-JAX reference (f32-accurate ground truth)
# ---------------------------------------------------------------------------
def conv_block_ref(x_nchw, params, eps=1e-5):
    x = x_nchw.astype(jnp.float32)
    for (w, gamma, beta) in params:
        y = jax.lax.conv_general_dilated(
            x, w, window_strides=(1, 1), padding="SAME",
            dimension_numbers=("NCHW", "HWIO", "NCHW"),
            precision=jax.lax.Precision.HIGHEST,
        )
        mean = jnp.mean(y, axis=(0, 2, 3), keepdims=True)
        var = jnp.mean((y - mean) ** 2, axis=(0, 2, 3), keepdims=True)
        yhat = (y - mean) * jax.lax.rsqrt(var + eps)
        x = jnp.maximum(gamma[None, :, None, None] * yhat
                        + beta[None, :, None, None], 0.0)
    return x


if __name__ == "__main__":
    key = jax.random.PRNGKey(0)
    k_x, k_w1, k_w2, k_g1, k_b1, k_g2, k_b2 = jax.random.split(key, 7)

    N, Cin, Cout, H, W = 2, 4, 8, 16, 16

    # Deterministic synthetic parameters (shapes from ConvBlock.__init__).
    w1 = jax.random.normal(k_w1, (3, 3, Cin, Cout), jnp.float32) * 0.1
    w2 = jax.random.normal(k_w2, (3, 3, Cout, Cout), jnp.float32) * 0.1
    gamma1 = 1.0 + 0.1 * jax.random.normal(k_g1, (Cout,), jnp.float32)
    beta1 = 0.1 * jax.random.normal(k_b1, (Cout,), jnp.float32)
    gamma2 = 1.0 + 0.1 * jax.random.normal(k_g2, (Cout,), jnp.float32)
    beta2 = 0.1 * jax.random.normal(k_b2, (Cout,), jnp.float32)

    params = [(w1, gamma1, beta1), (w2, gamma2, beta2)]

    x = jax.random.normal(k_x, (N, Cin, H, W), jnp.float32)  # NCHW, like PyTorch

    out = jax.block_until_ready(conv_block_forward(x, params))
    ref = jax.block_until_ready(conv_block_ref(x, params))

    assert out.shape == (N, Cout, H, W), out.shape
    # rtol tightened and variance is now two-pass; atol is kept at 1e-2 only
    # to cover a potential single-bf16-pass f32 MXU path vs the
    # HIGHEST-precision XLA reference conv (with full f32 matmul emulation
    # both sides agree to ~1e-6).
    assert jnp.allclose(out, ref, rtol=1e-3, atol=1e-2), (
        float(jnp.max(jnp.abs(out - ref))))

    print("KERNEL_OK")
</pallas_src>

<mosaic_0001>
module attributes {stable_mosaic.version = 11 : i64} {
  func.func @_conv_block_kernel(%arg0: i32, %arg1: memref<2x16x64xf32, #tpu.memory_space<vmem>>, %arg2: memref<3x64x128xf32, #tpu.memory_space<vmem>>, %arg3: memref<1x128xf32, #tpu.memory_space<vmem>>, %arg4: memref<1x128xf32, #tpu.memory_space<vmem>>, %arg5: memref<3x128x128xf32, #tpu.memory_space<vmem>>, %arg6: memref<1x128xf32, #tpu.memory_space<vmem>>, %arg7: memref<1x128xf32, #tpu.memory_space<vmem>>, %arg8: memref<128x128xf32, #tpu.memory_space<vmem>>, %arg9: memref<32x128xf32, #tpu.memory_space<vmem>>, %arg10: memref<2x18x64xf32, #tpu.memory_space<vmem>>, %arg11: memref<2x18x128xf32, #tpu.memory_space<vmem>>) attributes {dimension_semantics = [#tpu.dimension_semantics<arbitrary>], iteration_bounds = array<i64: 1>, scalar_prefetch = 0 : i64, scratch_operands = 2 : i64, tpu.core_type = #tpu.core_type<tc>, window_params = [{pipeline_mode = #tpu.pipeline_mode<synchronous>, transform_indices = @transform_0, window_bounds = array<i64: 2, 16, 64>}, {pipeline_mode = #tpu.pipeline_mode<synchronous>, transform_indices = @transform_1, window_bounds = array<i64: 3, 64, 128>}, {pipeline_mode = #tpu.pipeline_mode<synchronous>, transform_indices = @transform_2, window_bounds = array<i64: 1, 128>}, {pipeline_mode = #tpu.pipeline_mode<synchronous>, transform_indices = @transform_3, window_bounds = array<i64: 1, 128>}, {pipeline_mode = #tpu.pipeline_mode<synchronous>, transform_indices = @transform_4, window_bounds = array<i64: 3, 128, 128>}, {pipeline_mode = #tpu.pipeline_mode<synchronous>, transform_indices = @transform_5, window_bounds = array<i64: 1, 128>}, {pipeline_mode = #tpu.pipeline_mode<synchronous>, transform_indices = @transform_6, window_bounds = array<i64: 1, 128>}, {pipeline_mode = #tpu.pipeline_mode<synchronous>, transform_indices = @transform_7, window_bounds = array<i64: 128, 128>}, {pipeline_mode = #tpu.pipeline_mode<synchronous>, transform_indices = @transform_8, window_bounds = array<i64: 32, 128>}]} {
    %c0 = arith.constant 0 : index
    %c0_0 = arith.constant 0 : index
    %c0_1 = arith.constant 0 : index
    %0 = vector.load %arg1[%c0, %c0_0, %c0_1] : memref<2x16x64xf32, #tpu.memory_space<vmem>>, vector<2x16x64xf32>
    %cst = arith.constant 0.000000e+00 : f32
    %1 = vector.broadcast %cst : f32 to vector<2x1x64xf32>
    %c0_2 = arith.constant 0 : index
    %c0_3 = arith.constant 0 : index
    %c0_4 = arith.constant 0 : index
    %2 = vector.load %arg10[%c0_2, %c0_3, %c0_4] : memref<2x18x64xf32, #tpu.memory_space<vmem>>, vector<2x1x64xf32>
    tpu.vector_store %arg10[%c0_2, %c0_3, %c0_4], %1 {strides = array<i32>} : memref<2x18x64xf32, #tpu.memory_space<vmem>>, vector<2x1x64xf32>,
    %cst_5 = arith.constant 0.000000e+00 : f32
    %3 = vector.broadcast %cst_5 : f32 to vector<2x1x64xf32>
    %c0_6 = arith.constant 0 : index
    %c17 = arith.constant 17 : index
    %c0_7 = arith.constant 0 : index
    %4 = vector.load %arg10[%c0_6, %c17, %c0_7] : memref<2x18x64xf32, #tpu.memory_space<vmem>>, vector<2x1x64xf32>
    tpu.vector_store %arg10[%c0_6, %c17, %c0_7], %3 {strides = array<i32>} : memref<2x18x64xf32, #tpu.memory_space<vmem>>, vector<2x1x64xf32>,
    %c0_8 = arith.constant 0 : index
    %c1 = arith.constant 1 : index
    %c0_9 = arith.constant 0 : index
    %5 = vector.load %arg10[%c0_8, %c1, %c0_9] : memref<2x18x64xf32, #tpu.memory_space<vmem>>, vector<2x16x64xf32>
    tpu.vector_store %arg10[%c0_8, %c1, %c0_9], %0 {strides = array<i32>} : memref<2x18x64xf32, #tpu.memory_space<vmem>>, vector<2x16x64xf32>,
    %c0_10 = arith.constant 0 : index
    %c0_11 = arith.constant 0 : index
    %6 = vector.load %arg3[%c0_10, %c0_11] : memref<1x128xf32, #tpu.memory_space<vmem>>, vector<1x128xf32>
    %c0_12 = arith.constant 0 : index
    %c0_13 = arith.constant 0 : index
    %7 = vector.load %arg4[%c0_12, %c0_13] : memref<1x128xf32, #tpu.memory_space<vmem>>, vector<1x128xf32>
    %cst_14 = arith.constant 0.000000e+00 : f32
    %8 = vector.broadcast %cst_14 : f32 to vector<32x128xf32>
    %c0_15 = arith.constant 0 : index
    %c0_16 = arith.constant 0 : index
    %c0_17 = arith.constant 0 : index
    %9 = vector.load %arg10[%c0_15, %c0_16, %c0_17] : memref<2x18x64xf32, #tpu.memory_space<vmem>>, vector<2x16x64xf32>
    %10 = vector.shape_cast %9 : vector<2x16x64xf32> to vector<32x64xf32>
    %c0_18 = arith.constant 0 : index
    %c0_19 = arith.constant 0 : index
    %c0_20 = arith.constant 0 : index
    %11 = vector.load %arg2[%c0_18, %c0_19, %c0_20] : memref<3x64x128xf32, #tpu.memory_space<vmem>>, vector<1x64x128xf32>
    %12 = vector.shape_cast %11 : vector<1x64x128xf32> to vector<64x128xf32>
    %cst_21 = arith.constant dense<0.000000e+00> : vector<32x128xf32>
    %13 = tpu.matmul %10, %12, %cst_21 {dimension_numbers = #tpu.dot_dimension_numbers<[1], [0], [0], [1], [0, 0, 1, 1], [], []>} : vector<32x64xf32>, vector<64x128xf32>, vector<32x128xf32> -> vector<32x128xf32>
    %14 = arith.addf %8, %13 : vector<32x128xf32>
    %c0_22 = arith.constant 0 : index
    %c1_23 = arith.constant 1 : index
    %c0_24 = arith.constant 0 : index
    %15 = vector.load %arg10[%c0_22, %c1_23, %c0_24] : memref<2x18x64xf32, #tpu.memory_space<vmem>>, vector<2x16x64xf32>
    %16 = vector.shape_cast %15 : vector<2x16x64xf32> to vector<32x64xf32>
    %c1_25 = arith.constant 1 : index
    %c0_26 = arith.constant 0 : index
    %c0_27 = arith.constant 0 : index
    %17 = vector.load %arg2[%c1_25, %c0_26, %c0_27] : memref<3x64x128xf32, #tpu.memory_space<vmem>>, vector<1x64x128xf32>
    %18 = vector.shape_cast %17 : vector<1x64x128xf32> to vector<64x128xf32>
    %cst_28 = arith.constant dense<0.000000e+00> : vector<32x128xf32>
    %19 = tpu.matmul %16, %18, %cst_28 {dimension_numbers = #tpu.dot_dimension_numbers<[1], [0], [0], [1], [0, 0, 1, 1], [], []>} : vector<32x64xf32>, vector<64x128xf32>, vector<32x128xf32> -> vector<32x128xf32>
    %20 = arith.addf %14, %19 : vector<32x128xf32>
    %c0_29 = arith.constant 0 : index
    %c2 = arith.constant 2 : index
    %c0_30 = arith.constant 0 : index
    %21 = vector.load %arg10[%c0_29, %c2, %c0_30] : memref<2x18x64xf32, #tpu.memory_space<vmem>>, vector<2x16x64xf32>
    %22 = vector.shape_cast %21 : vector<2x16x64xf32> to vector<32x64xf32>
    %c2_31 = arith.constant 2 : index
    %c0_32 = arith.constant 0 : index
    %c0_33 = arith.constant 0 : index
    %23 = vector.load %arg2[%c2_31, %c0_32, %c0_33] : memref<3x64x128xf32, #tpu.memory_space<vmem>>, vector<1x64x128xf32>
    %24 = vector.shape_cast %23 : vector<1x64x128xf32> to vector<64x128xf32>
    %cst_34 = arith.constant dense<0.000000e+00> : vector<32x128xf32>
    %25 = tpu.matmul %22, %24, %cst_34 {dimension_numbers = #tpu.dot_dimension_numbers<[1], [0], [0], [1], [0, 0, 1, 1], [], []>} : vector<32x64xf32>, vector<64x128xf32>, vector<32x128xf32> -> vector<32x128xf32>
    %26 = arith.addf %20, %25 : vector<32x128xf32>
    %cst_35 = arith.constant dense<0.000000e+00> : vector<128xf32>
    %27 = vector.multi_reduction <add>, %26, %cst_35 [0] : vector<32x128xf32> to vector<128xf32>
    %28 = vector.shape_cast %27 : vector<128xf32> to vector<1x128xf32>
    %c0_36 = arith.constant 0 : index
    %c0_37 = arith.constant 0 : index
    %29 = vector.load %arg8[%c0_36, %c0_37] : memref<128x128xf32, #tpu.memory_space<vmem>>, vector<128x128xf32>
    %cst_38 = arith.constant dense<0.000000e+00> : vector<1x128xf32>
    %30 = tpu.matmul %28, %29, %cst_38 {dimension_numbers = #tpu.dot_dimension_numbers<[1], [0], [0], [1], [0, 0, 1, 1], [], []>} : vector<1x128xf32>, vector<128x128xf32>, vector<1x128xf32> -> vector<1x128xf32>
    %cst_39 = arith.constant 5.120000e+02 : f32
    %31 = vector.broadcast %cst_39 : f32 to vector<1x128xf32>
    %32 = arith.divf %30, %31 : vector<1x128xf32>
    %33 = vector.broadcast %32 : vector<1x128xf32> to vector<32x128xf32>
    %34 = arith.subf %26, %33 : vector<32x128xf32>
    %35 = arith.mulf %34, %34 : vector<32x128xf32>
    %cst_40 = arith.constant dense<0.000000e+00> : vector<128xf32>
    %36 = vector.multi_reduction <add>, %35, %cst_40 [0] : vector<32x128xf32> to vector<128xf32>
    %37 = vector.shape_cast %36 : vector<128xf32> to vector<1x128xf32>
    %c0_41 = arith.constant 0 : index
    %c0_42 = arith.constant 0 : index
    %38 = vector.load %arg8[%c0_41, %c0_42] : memref<128x128xf32, #tpu.memory_space<vmem>>, vector<128x128xf32>
    %cst_43 = arith.constant dense<0.000000e+00> : vector<1x128xf32>
    %39 = tpu.matmul %37, %38, %cst_43 {dimension_numbers = #tpu.dot_dimension_numbers<[1], [0], [0], [1], [0, 0, 1, 1], [], []>} : vector<1x128xf32>, vector<128x128xf32>, vector<1x128xf32> -> vector<1x128xf32>
    %cst_44 = arith.constant 5.120000e+02 : f32
    %40 = vector.broadcast %cst_44 : f32 to vector<1x128xf32>
    %41 = arith.divf %39, %40 : vector<1x128xf32>
    %cst_45 = arith.constant 9.99999974E-6 : f32
    %42 = vector.broadcast %cst_45 : f32 to vector<1x128xf32>
    %43 = arith.addf %41, %42 : vector<1x128xf32>
    %44 = math.rsqrt %43 : vector<1x128xf32>
    %45 = arith.mulf %6, %44 : vector<1x128xf32>
    %46 = vector.broadcast %45 : vector<1x128xf32> to vector<32x128xf32>
    %47 = arith.mulf %34, %46 : vector<32x128xf32>
    %48 = vector.broadcast %7 : vector<1x128xf32> to vector<32x128xf32>
    %49 = arith.addf %47, %48 : vector<32x128xf32>
    %cst_46 = arith.constant 0.000000e+00 : f32
    %50 = vector.broadcast %cst_46 : f32 to vector<32x128xf32>
    %51 = arith.maximumf %49, %50 : vector<32x128xf32>
    %52 = vector.shape_cast %51 : vector<32x128xf32> to vector<2x16x128xf32>
    %cst_47 = arith.constant 0.000000e+00 : f32
    %53 = vector.broadcast %cst_47 : f32 to vector<2x1x128xf32>
    %c0_48 = arith.constant 0 : index
    %c0_49 = arith.constant 0 : index
    %c0_50 = arith.constant 0 : index
    %54 = vector.load %arg11[%c0_48, %c0_49, %c0_50] : memref<2x18x128xf32, #tpu.memory_space<vmem>>, vector<2x1x128xf32>
    tpu.vector_store %arg11[%c0_48, %c0_49, %c0_50], %53 {strides = array<i32>} : memref<2x18x128xf32, #tpu.memory_space<vmem>>, vector<2x1x128xf32>,
    %cst_51 = arith.constant 0.000000e+00 : f32
    %55 = vector.broadcast %cst_51 : f32 to vector<2x1x128xf32>
    %c0_52 = arith.constant 0 : index
    %c17_53 = arith.constant 17 : index
    %c0_54 = arith.constant 0 : index
    %56 = vector.load %arg11[%c0_52, %c17_53, %c0_54] : memref<2x18x128xf32, #tpu.memory_space<vmem>>, vector<2x1x128xf32>
    tpu.vector_store %arg11[%c0_52, %c17_53, %c0_54], %55 {strides = array<i32>} : memref<2x18x128xf32, #tpu.memory_space<vmem>>, vector<2x1x128xf32>,
    %c0_55 = arith.constant 0 : index
    %c1_56 = arith.constant 1 : index
    %c0_57 = arith.constant 0 : index
    %57 = vector.load %arg11[%c0_55, %c1_56, %c0_57] : memref<2x18x128xf32, #tpu.memory_space<vmem>>, vector<2x16x128xf32>
    tpu.vector_store %arg11[%c0_55, %c1_56, %c0_57], %52 {strides = array<i32>} : memref<2x18x128xf32, #tpu.memory_space<vmem>>, vector<2x16x128xf32>,
    %c0_58 = arith.constant 0 : index
    %c0_59 = arith.constant 0 : index
    %58 = vector.load %arg6[%c0_58, %c0_59] : memref<1x128xf32, #tpu.memory_space<vmem>>, vector<1x128xf32>
    %c0_60 = arith.constant 0 : index
    %c0_61 = arith.constant 0 : index
    %59 = vector.load %arg7[%c0_60, %c0_61] : memref<1x128xf32, #tpu.memory_space<vmem>>, vector<1x128xf32>
    %cst_62 = arith.constant 0.000000e+00 : f32
    %60 = vector.broadcast %cst_62 : f32 to vector<32x128xf32>
    %c0_63 = arith.constant 0 : index
    %c0_64 = arith.constant 0 : index
    %c0_65 = arith.constant 0 : index
    %61 = vector.load %arg11[%c0_63, %c0_64, %c0_65] : memref<2x18x128xf32, #tpu.memory_space<vmem>>, vector<2x16x128xf32>
    %62 = vector.shape_cast %61 : vector<2x16x128xf32> to vector<32x128xf32>
    %c0_66 = arith.constant 0 : index
    %c0_67 = arith.constant 0 : index
    %c0_68 = arith.constant 0 : index
    %63 = vector.load %arg5[%c0_66, %c0_67, %c0_68] : memref<3x128x128xf32, #tpu.memory_space<vmem>>, vector<1x128x128xf32>
    %64 = vector.shape_cast %63 : vector<1x128x128xf32> to vector<128x128xf32>
    %cst_69 = arith.constant dense<0.000000e+00> : vector<32x128xf32>
    %65 = tpu.matmul %62, %64, %cst_69 {dimension_numbers = #tpu.dot_dimension_numbers<[1], [0], [0], [1], [0, 0, 1, 1], [], []>} : vector<32x128xf32>, vector<128x128xf32>, vector<32x128xf32> -> vector<32x128xf32>
    %66 = arith.addf %60, %65 : vector<32x128xf32>
    %c0_70 = arith.constant 0 : index
    %c1_71 = arith.constant 1 : index
    %c0_72 = arith.constant 0 : index
    %67 = vector.load %arg11[%c0_70, %c1_71, %c0_72] : memref<2x18x128xf32, #tpu.memory_space<vmem>>, vector<2x16x128xf32>
    %68 = vector.shape_cast %67 : vector<2x16x128xf32> to vector<32x128xf32>
    %c1_73 = arith.constant 1 : index
    %c0_74 = arith.constant 0 : index
    %c0_75 = arith.constant 0 : index
    %69 = vector.load %arg5[%c1_73, %c0_74, %c0_75] : memref<3x128x128xf32, #tpu.memory_space<vmem>>, vector<1x128x128xf32>
    %70 = vector.shape_cast %69 : vector<1x128x128xf32> to vector<128x128xf32>
    %cst_76 = arith.constant dense<0.000000e+00> : vector<32x128xf32>
    %71 = tpu.matmul %68, %70, %cst_76 {dimension_numbers = #tpu.dot_dimension_numbers<[1], [0], [0], [1], [0, 0, 1, 1], [], []>} : vector<32x128xf32>, vector<128x128xf32>, vector<32x128xf32> -> vector<32x128xf32>
    %72 = arith.addf %66, %71 : vector<32x128xf32>
    %c0_77 = arith.constant 0 : index
    %c2_78 = arith.constant 2 : index
    %c0_79 = arith.constant 0 : index
    %73 = vector.load %arg11[%c0_77, %c2_78, %c0_79] : memref<2x18x128xf32, #tpu.memory_space<vmem>>, vector<2x16x128xf32>
    %74 = vector.shape_cast %73 : vector<2x16x128xf32> to vector<32x128xf32>
    %c2_80 = arith.constant 2 : index
    %c0_81 = arith.constant 0 : index
    %c0_82 = arith.constant 0 : index
    %75 = vector.load %arg5[%c2_80, %c0_81, %c0_82] : memref<3x128x128xf32, #tpu.memory_space<vmem>>, vector<1x128x128xf32>
    %76 = vector.shape_cast %75 : vector<1x128x128xf32> to vector<128x128xf32>
    %cst_83 = arith.constant dense<0.000000e+00> : vector<32x128xf32>
    %77 = tpu.matmul %74, %76, %cst_83 {dimension_numbers = #tpu.dot_dimension_numbers<[1], [0], [0], [1], [0, 0, 1, 1], [], []>} : vector<32x128xf32>, vector<128x128xf32>, vector<32x128xf32> -> vector<32x128xf32>
    %78 = arith.addf %72, %77 : vector<32x128xf32>
    %cst_84 = arith.constant dense<0.000000e+00> : vector<128xf32>
    %79 = vector.multi_reduction <add>, %78, %cst_84 [0] : vector<32x128xf32> to vector<128xf32>
    %80 = vector.shape_cast %79 : vector<128xf32> to vector<1x128xf32>
    %c0_85 = arith.constant 0 : index
    %c0_86 = arith.constant 0 : index
    %81 = vector.load %arg8[%c0_85, %c0_86] : memref<128x128xf32, #tpu.memory_space<vmem>>, vector<128x128xf32>
    %cst_87 = arith.constant dense<0.000000e+00> : vector<1x128xf32>
    %82 = tpu.matmul %80, %81, %cst_87 {dimension_numbers = #tpu.dot_dimension_numbers<[1], [0], [0], [1], [0, 0, 1, 1], [], []>} : vector<1x128xf32>, vector<128x128xf32>, vector<1x128xf32> -> vector<1x128xf32>
    %cst_88 = arith.constant 5.120000e+02 : f32
    %83 = vector.broadcast %cst_88 : f32 to vector<1x128xf32>
    %84 = arith.divf %82, %83 : vector<1x128xf32>
    %85 = vector.broadcast %84 : vector<1x128xf32> to vector<32x128xf32>
    %86 = arith.subf %78, %85 : vector<32x128xf32>
    %87 = arith.mulf %86, %86 : vector<32x128xf32>
    %cst_89 = arith.constant dense<0.000000e+00> : vector<128xf32>
    %88 = vector.multi_reduction <add>, %87, %cst_89 [0] : vector<32x128xf32> to vector<128xf32>
    %89 = vector.shape_cast %88 : vector<128xf32> to vector<1x128xf32>
    %c0_90 = arith.constant 0 : index
    %c0_91 = arith.constant 0 : index
    %90 = vector.load %arg8[%c0_90, %c0_91] : memref<128x128xf32, #tpu.memory_space<vmem>>, vector<128x128xf32>
    %cst_92 = arith.constant dense<0.000000e+00> : vector<1x128xf32>
    %91 = tpu.matmul %89, %90, %cst_92 {dimension_numbers = #tpu.dot_dimension_numbers<[1], [0], [0], [1], [0, 0, 1, 1], [], []>} : vector<1x128xf32>, vector<128x128xf32>, vector<1x128xf32> -> vector<1x128xf32>
    %cst_93 = arith.constant 5.120000e+02 : f32
    %92 = vector.broadcast %cst_93 : f32 to vector<1x128xf32>
    %93 = arith.divf %91, %92 : vector<1x128xf32>
    %cst_94 = arith.constant 9.99999974E-6 : f32
    %94 = vector.broadcast %cst_94 : f32 to vector<1x128xf32>
    %95 = arith.addf %93, %94 : vector<1x128xf32>
    %96 = math.rsqrt %95 : vector<1x128xf32>
    %97 = arith.mulf %58, %96 : vector<1x128xf32>
    %98 = vector.broadcast %97 : vector<1x128xf32> to vector<32x128xf32>
    %99 = arith.mulf %86, %98 : vector<32x128xf32>
    %100 = vector.broadcast %59 : vector<1x128xf32> to vector<32x128xf32>
    %101 = arith.addf %99, %100 : vector<32x128xf32>
    %cst_95 = arith.constant 0.000000e+00 : f32
    %102 = vector.broadcast %cst_95 : f32 to vector<32x128xf32>
    %103 = arith.maximumf %101, %102 : vector<32x128xf32>
    %c0_96 = arith.constant 0 : index
    %c0_97 = arith.constant 0 : index
    %104 = vector.load %arg9[%c0_96, %c0_97] : memref<32x128xf32, #tpu.memory_space<vmem>>, vector<32x128xf32>
    tpu.vector_store %arg9[%c0_96, %c0_97], %103 {strides = array<i32>} : memref<32x128xf32, #tpu.memory_space<vmem>>, vector<32x128xf32>,
    return
  }
  func.func @transform_0(%arg0: i32) -> (i32, i32, i32) {
    %c0_i32 = arith.constant 0 : i32
    %c0_i32_0 = arith.constant 0 : i32
    %c0_i32_1 = arith.constant 0 : i32
    %c0_i32_2 = arith.constant 0 : i32
    return %c0_i32, %c0_i32_0, %c0_i32_1 : i32, i32, i32
  }
  func.func @transform_1(%arg0: i32) -> (i32, i32, i32) {
    %c0_i32 = arith.constant 0 : i32
    %c0_i32_0 = arith.constant 0 : i32
    %c0_i32_1 = arith.constant 0 : i32
    %c0_i32_2 = arith.constant 0 : i32
    return %c0_i32, %c0_i32_0, %c0_i32_1 : i32, i32, i32
  }
  func.func @transform_2(%arg0: i32) -> (i32, i32) {
    %c0_i32 = arith.constant 0 : i32
    %c0_i32_0 = arith.constant 0 : i32
    %c0_i32_1 = arith.constant 0 : i32
    return %c0_i32, %c0_i32_0 : i32, i32
  }
  func.func @transform_3(%arg0: i32) -> (i32, i32) {
    %c0_i32 = arith.constant 0 : i32
    %c0_i32_0 = arith.constant 0 : i32
    %c0_i32_1 = arith.constant 0 : i32
    return %c0_i32, %c0_i32_0 : i32, i32
  }
  func.func @transform_4(%arg0: i32) -> (i32, i32, i32) {
    %c0_i32 = arith.constant 0 : i32
    %c0_i32_0 = arith.constant 0 : i32
    %c0_i32_1 = arith.constant 0 : i32
    %c0_i32_2 = arith.constant 0 : i32
    return %c0_i32, %c0_i32_0, %c0_i32_1 : i32, i32, i32
  }
  func.func @transform_5(%arg0: i32) -> (i32, i32) {
    %c0_i32 = arith.constant 0 : i32
    %c0_i32_0 = arith.constant 0 : i32
    %c0_i32_1 = arith.constant 0 : i32
    return %c0_i32, %c0_i32_0 : i32, i32
  }
  func.func @transform_6(%arg0: i32) -> (i32, i32) {
    %c0_i32 = arith.constant 0 : i32
    %c0_i32_0 = arith.constant 0 : i32
    %c0_i32_1 = arith.constant 0 : i32
    return %c0_i32, %c0_i32_0 : i32, i32
  }
  func.func @transform_7(%arg0: i32) -> (i32, i32) {
    %c0_i32 = arith.constant 0 : i32
    %c0_i32_0 = arith.constant 0 : i32
    %c0_i32_1 = arith.constant 0 : i32
    return %c0_i32, %c0_i32_0 : i32, i32
  }
  func.func @transform_8(%arg0: i32) -> (i32, i32) {
    %c0_i32 = arith.constant 0 : i32
    %c0_i32_0 = arith.constant 0 : i32
    %c0_i32_1 = arith.constant 0 : i32
    return %c0_i32, %c0_i32_0 : i32, i32
  }
}

</mosaic_0001>

<llo_original>
// kernel: tpu_custom_call.1
$region0: #{tpu_custom_call.1}
  #allocation0 [shape = 'u32[]', space=smem, size = 0x4, offset = 0x4, fixed_abs, tag = 'smem constant byte address 0x4 - core index']
  #allocation1 [shape = 'u32[144,128]{1,0:T(1,128)}', space=vmem, size = 0x12000, scoped, tag = 'internal scratch']
  #allocation2 [shape = 'f32[2,18,64]{2,1,0:T(8,128)}', space=vmem, size = 0x6000, scoped, tag = 'scratch operand']
  #allocation3 [shape = 'f32[2,18,128]{2,1,0:T(8,128)}', space=vmem, size = 0x6000, scoped, tag = 'scratch operand']
  %s0 = inlined_call_operand.hbm [shape: f32[2,16,64], index: 0, kind: input, shape index: {}]
  %s1 = inlined_call_operand.hbm [shape: f32[3,64,128], index: 1, kind: input, shape index: {}]
  %s2 = inlined_call_operand.vmem [shape: f32[1,128], index: 2, kind: input, shape index: {}]
  %s3 = inlined_call_operand.vmem [shape: f32[1,128], index: 3, kind: input, shape index: {}]
  %s4 = inlined_call_operand.hbm [shape: f32[3,128,128], index: 4, kind: input, shape index: {}]
  %s5 = inlined_call_operand.vmem [shape: f32[1,128], index: 5, kind: input, shape index: {}]
  %s6 = inlined_call_operand.vmem [shape: f32[1,128], index: 6, kind: input, shape index: {}]
  %s7 = inlined_call_operand.hbm [shape: f32[128,128], index: 7, kind: input, shape index: {}]
  %s8 = inlined_call_operand.hbm [shape: f32[32,128], index: 8, kind: output, shape index: {}]
  %s9 = sld [smem:[#allocation0]]
  $region58: #{tpu_custom_call.1} parent=0
    _
  %s11 = ssub.s32 1, %s9
  %s12 = scalar_select 0, %s11, %s9
  $region1: #{tpu_custom_call.1} parent=0
    #allocation4 [shape = 'u8[16384]{0}', space=vmem, size = 0x4000, scoped, tag = 'input window, operand 0, single buffered']
    #allocation5 [shape = 's32[1]{0}', space=sflag, size = 0x4, scoped, tag = 'scoped memory for tpu_custom_call.1']
    #allocation6 [shape = 's32[1]{0}', space=sflag, size = 0x4, scoped, tag = 'scoped memory for tpu_custom_call.1']
    #allocation7 [shape = 'u8[98304]{0}', space=vmem, size = 0x18000, scoped, tag = 'input window, operand 1, single buffered']
    #allocation8 [shape = 's32[1]{0}', space=sflag, size = 0x4, scoped, tag = 'scoped memory for tpu_custom_call.1']
    #allocation9 [shape = 'u8[196608]{0}', space=vmem, size = 0x30000, scoped, tag = 'input window, operand 4, single buffered']
    #allocation10 [shape = 'u8[65536]{0}', space=vmem, size = 0x10000, scoped, tag = 'input window, operand 7, single buffered']
    #allocation11 [shape = 's32[1]{0}', space=sflag, size = 0x4, scoped, tag = 'scoped memory for tpu_custom_call.1']
    #allocation12 [shape = 'u8[16384]{0}', space=vmem, size = 0x4000, scoped, tag = 'output window, operand 0, single buffered']
    %13 = vsyncpa [#allocation5], 0
    %14 = vsyncpa [#allocation8], 0
    %15 = vsyncpa [#allocation11], 0
    %16 = vsyncpa [#allocation6], 0
    // Predicated region
    $region2: #{tpu_custom_call.1} parent=1 // pred_check
      _
    $region3: #{tpu_custom_call.1} parent=1 // pred_check_branch
      %18 = sbr.rel (0) target = $region5
    $region4: #{tpu_custom_call.1} parent=1 // pred_region
      %s20 = ssub.s32 512, 512
      %21 = vsyncadd [#allocation5], %s20
      %s22 = sshll.u32 [#allocation4], 4
      %s23 = int_to_ptr.vmem [resolvable:$true] %s22
      %28 = dma.hbm_to_vmem [thread:$0]  %s0, 512, %s23, [#allocation5], 128, 128, 8
    $region5: #{tpu_custom_call.1} parent=1 // pred_fallthru
      _
    // Predicated region
    $region6: #{tpu_custom_call.1} parent=1 // pred_check
      _
    $region7: #{tpu_custom_call.1} parent=1 // pred_check_branch
      %30 = sbr.rel (0) target = $region9
    $region8: #{tpu_custom_call.1} parent=1 // pred_region
      %s32 = ssub.s32 3072, 3072
      %33 = vsyncadd [#allocation8], %s32
      %s34 = sshll.u32 [#allocation7], 4
      %s35 = int_to_ptr.vmem [resolvable:$true] %s34
      %40 = dma.hbm_to_vmem [thread:$0]  %s1, 3072, %s35, [#allocation8], 128, 128, 8
    $region9: #{tpu_custom_call.1} parent=1 // pred_fallthru
      _
    // Predicated region
    $region10: #{tpu_custom_call.1} parent=1 // pred_check
      _
    $region11: #{tpu_custom_call.1} parent=1 // pred_check_branch
      %42 = sbr.rel (0) target = $region13
    $region12: #{tpu_custom_call.1} parent=1 // pred_region
      _
    $region13: #{tpu_custom_call.1} parent=1 // pred_fallthru
      _
    // Predicated region
    $region14: #{tpu_custom_call.1} parent=1 // pred_check
      _
    $region15: #{tpu_custom_call.1} parent=1 // pred_check_branch
      %44 = sbr.rel (0) target = $region17
    $region16: #{tpu_custom_call.1} parent=1 // pred_region
      _
    $region17: #{tpu_custom_call.1} parent=1 // pred_fallthru
      _
    // Predicated region
    $region18: #{tpu_custom_call.1} parent=1 // pred_check
      _
    $region19: #{tpu_custom_call.1} parent=1 // pred_check_branch
      %46 = sbr.rel (0) target = $region21
    $region20: #{tpu_custom_call.1} parent=1 // pred_region
      %s48 = ssub.s32 6144, 6144
      %49 = vsyncadd [#allocation8], %s48
      %s50 = sshll.u32 [#allocation9], 4
      %s51 = int_to_ptr.vmem [resolvable:$true] %s50
      %56 = dma.hbm_to_vmem [thread:$0]  %s4, 6144, %s51, [#allocation8], 128, 128, 8
    $region21: #{tpu_custom_call.1} parent=1 // pred_fallthru
      _
    // Predicated region
    $region22: #{tpu_custom_call.1} parent=1 // pred_check
      _
    $region23: #{tpu_custom_call.1} parent=1 // pred_check_branch
      %58 = sbr.rel (0) target = $region25
    $region24: #{tpu_custom_call.1} parent=1 // pred_region
      _
    $region25: #{tpu_custom_call.1} parent=1 // pred_fallthru
      _
    // Predicated region
    $region26: #{tpu_custom_call.1} parent=1 // pred_check
      _
    $region27: #{tpu_custom_call.1} parent=1 // pred_check_branch
      %60 = sbr.rel (0) target = $region29
    $region28: #{tpu_custom_call.1} parent=1 // pred_region
      _
    $region29: #{tpu_custom_call.1} parent=1 // pred_fallthru
      _
    // Predicated region
    $region30: #{tpu_custom_call.1} parent=1 // pred_check
      _
    $region31: #{tpu_custom_call.1} parent=1 // pred_check_branch
      %62 = sbr.rel (0) target = $region33
    $region32: #{tpu_custom_call.1} parent=1 // pred_region
      %s64 = ssub.s32 2048, 2048
      %65 = vsyncadd [#allocation11], %s64
      %s66 = sshll.u32 [#allocation10], 4
      %s67 = int_to_ptr.vmem [resolvable:$true] %s66
      %72 = dma.hbm_to_vmem [thread:$0]  %s7, 2048, %s67, [#allocation11], 128, 128, 8
    $region33: #{tpu_custom_call.1} parent=1 // pred_fallthru
      _
    // Predicated region
    $region34: #{tpu_custom_call.1} parent=1 // pred_check
      _
    $region35: #{tpu_custom_call.1} parent=1 // pred_check_branch
      %74 = sbr.rel (0) target = $region37
    $region36: #{tpu_custom_call.1} parent=1 // pred_region
      %75 = dma.done [#allocation5], 512
    $region37: #{tpu_custom_call.1} parent=1 // pred_fallthru
      _
    // Predicated region
    $region38: #{tpu_custom_call.1} parent=1 // pred_check
      _
    $region39: #{tpu_custom_call.1} parent=1 // pred_check_branch
      %77 = sbr.rel (0) target = $region41
    $region40: #{tpu_custom_call.1} parent=1 // pred_region
      %78 = dma.done [#allocation8], 3072
    $region41: #{tpu_custom_call.1} parent=1 // pred_fallthru
      _
    // Predicated region
    $region42: #{tpu_custom_call.1} parent=1 // pred_check
      _
    $region43: #{tpu_custom_call.1} parent=1 // pred_check_branch
      %80 = sbr.rel (0) target = $region45
    $region44: #{tpu_custom_call.1} parent=1 // pred_region
      %81 = dma.done [#allocation8], 6144
    $region45: #{tpu_custom_call.1} parent=1 // pred_fallthru
      _
    // Predicated region
    $region46: #{tpu_custom_call.1} parent=1 // pred_check
      _
    $region47: #{tpu_custom_call.1} parent=1 // pred_check_branch
      %83 = sbr.rel (0) target = $region49
    $region48: #{tpu_custom_call.1} parent=1 // pred_region
      %84 = dma.done [#allocation11], 2048
    $region49: #{tpu_custom_call.1} parent=1 // pred_fallthru
      _
    %v85 = vld [vmem:[#allocation4] sm:$0xff]
    %v86 = vld [vmem:[#allocation4 + $0x8] sm:$0xff]
    %v87 = vld [vmem:[#allocation4 + $0x10] sm:$0xff]
    %v88 = vld [vmem:[#allocation4 + $0x18] sm:$0xff]
    %vm89 = vcmask 516096
    %90 = vst.msk [vmem:[#allocation2] sm:$0x1] %vm89, 0.0
    %91 = vst.msk [vmem:[#allocation2 + $0x18] sm:$0x1] %vm89, 0.0
    %92 = vst.msk [vmem:[#allocation2 + $0x11] sm:$0x1] %vm89, 0.0
    %93 = vst.msk [vmem:[#allocation2 + $0x29] sm:$0x1] %vm89, 0.0
    %vm94 = vcmask 523264
    %95 = vst.msk [vmem:[#allocation2 + $0x1] sm:$0xff] %vm94, %v85
    %96 = vst.msk [vmem:[#allocation2 + $0x9] sm:$0xff] %vm94, %v86
    %97 = vst.msk [vmem:[#allocation2 + $0x19] sm:$0xff] %vm94, %v87
    %98 = vst.msk [vmem:[#allocation2 + $0x21] sm:$0xff] %vm94, %v88
    %v99 = vld [vmem:[%s2] sm:$0x1]
    %v100 = vld [vmem:[%s3] sm:$0x1]
    %v101 = vld [vmem:[#allocation2] sm:$0xff]
    %v102 = vld [vmem:[#allocation2 + $0x8] sm:$0xff]
    %v103 = vld [vmem:[#allocation2 + $0x18] sm:$0xff]
    %v104 = vld [vmem:[#allocation2 + $0x20] sm:$0xff]
    %v105 = vld [vmem:[#allocation7] sm:$0xff]
    %v106 = vld [vmem:[#allocation7 + $0x8] sm:$0xff]
    %v107 = vld [vmem:[#allocation7 + $0x10] sm:$0xff]
    %v108 = vld [vmem:[#allocation7 + $0x18] sm:$0xff]
    %v109 = vld [vmem:[#allocation7 + $0x20] sm:$0xff]
    %v110 = vld [vmem:[#allocation7 + $0x28] sm:$0xff]
    %v111 = vld [vmem:[#allocation7 + $0x30] sm:$0xff]
    %v112 = vld [vmem:[#allocation7 + $0x38] sm:$0xff]
    %v113 = vld [vmem:[#allocation2 + $0x1] sm:$0xff]
    %v114 = vld [vmem:[#allocation2 + $0x9] sm:$0xff]
    %v115 = vld [vmem:[#allocation2 + $0x19] sm:$0xff]
    %v116 = vld [vmem:[#allocation2 + $0x21] sm:$0xff]
    %s117 = scalar_lea.vmem [#allocation7], 64
    %v118 = vld [vmem:[%s117] sm:$0xff]
    %v119 = vld [vmem:[%s117 + $0x8] sm:$0xff]
    %v120 = vld [vmem:[%s117 + $0x10] sm:$0xff]
    %v121 = vld [vmem:[%s117 + $0x18] sm:$0xff]
    %v122 = vld [vmem:[%s117 + $0x20] sm:$0xff]
    %v123 = vld [vmem:[%s117 + $0x28] sm:$0xff]
    %v124 = vld [vmem:[%s117 + $0x30] sm:$0xff]
    %v125 = vld [vmem:[%s117 + $0x38] sm:$0xff]
    %v127 = vsel %vm94, %v113, 0
    %v130 = vsel %vm94, %v114, 0
    %v133 = vsel %vm94, %v115, 0
    %v136 = vsel %vm94, %v116, 0
    %138 = vmatprep.subr.mxu0 0.0
    %139 = vmatpush1.msra.mxu0 0.0
    %140 = vmatprep.subr.mxu0 0.0
    %141 = vmatpush1.msra.mxu0 0.0
    %142 = vmatprep.subr.mxu0 0.0
    %143 = vmatpush1.msra.mxu0 0.0
    %144 = vmatprep.subr.mxu0 0.0
    %145 = vmatpush1.msra.mxu0 0.0
    %146 = vmatprep.subr.mxu0 0.0
    %147 = vmatpush1.msra.mxu0 0.0
    %148 = vmatprep.subr.mxu0 0.0
    %149 = vmatpush1.msra.mxu0 0.0
    %150 = vmatprep.subr.mxu0 0.0
    %151 = vmatpush1.msra.mxu0 0.0
    %152 = vmatprep.subr.mxu0 0.0
    %153 = vmatpush1.msra.mxu0 0.0
    %154 = vmatprep.subr.mxu0 0.0
    %155 = vmatpush1.msra.mxu0 %v125
    %156 = vmatprep.subr.mxu0 0.0
    %157 = vmatpush1.msra.mxu0 %v124
    %158 = vmatprep.subr.mxu0 0.0
    %159 = vmatpush1.msra.mxu0 %v123
    %160 = vmatprep.subr.mxu0 0.0
    %161 = vmatpush1.msra.mxu0 %v122
    %162 = vmatprep.subr.mxu0 0.0
    %163 = vmatpush1.msra.mxu0 %v121
    %164 = vmatprep.subr.mxu0 0.0
    %165 = vmatpush1.msra.mxu0 %v120
    %166 = vmatprep.subr.mxu0 0.0
    %167 = vmatpush1.msra.mxu0 %v119
    %168 = vmatprep.subr.mxu0 0.0
    %169 = vmatpush1.msra.mxu0 %v118
    %170 = vmatprep.subr.mxu0 0.0
    %171 = vmatpush2.msra.mxu0 0.0
    %172 = vmatprep.subr.mxu0 0.0
    %173 = vmatpush2.msra.mxu0 0.0
    %174 = vmatprep.subr.mxu0 0.0
    %175 = vmatpush2.msra.mxu0 0.0
    %176 = vmatprep.subr.mxu0 0.0
    %177 = vmatpush2.msra.mxu0 0.0
    %178 = vmatprep.subr.mxu0 0.0
    %179 = vmatpush2.msra.mxu0 0.0
    %180 = vmatprep.subr.mxu0 0.0
    %181 = vmatpush2.msra.mxu0 0.0
    %182 = vmatprep.subr.mxu0 0.0
    %183 = vmatpush2.msra.mxu0 0.0
    %184 = vmatprep.subr.mxu0 0.0
    %185 = vmatpush2.msra.mxu0 0.0
    %186 = vmatprep.subr.mxu0 0.0
    %187 = vmatpush2.msra.mxu0 0.0
    %188 = vmatprep.subr.mxu0 0.0
    %189 = vmatpush2.msra.mxu0 0.0
    %190 = vmatprep.subr.mxu0 0.0
    %191 = vmatpush2.msra.mxu0 0.0
    %192 = vmatprep.subr.mxu0 0.0
    %193 = vmatpush2.msra.mxu0 0.0
    %194 = vmatprep.subr.mxu0 0.0
    %195 = vmatpush2.msra.mxu0 0.0
    %196 = vmatprep.subr.mxu0 0.0
    %197 = vmatpush2.msra.mxu0 0.0
    %198 = vmatprep.subr.mxu0 0.0
    %199 = vmatpush2.msra.mxu0 0.0
    %200 = vmatprep.subr.mxu0 0.0
    %201 = vmatpush2.msra.mxu0 0.0
    %202 = vmatprep.mubr.f32.mxu0 0.0
    %203 = vmatmul.mubr.f32.gmra.mxu0 %v127
    %v204 = vpop.f32.mrf.mxu0
    %v205 = vadd.f32 0.0, %v204
    %v206 = vpop.f32.mrf.mxu0
    %207 = vmatprep.mubr.f32.mxu0 0.0
    %208 = vmatmul.mubr.f32.gmra.mxu0 %v130
    %v209 = vpop.f32.mrf.mxu0
    %v210 = vadd.f32 0.0, %v209
    %v211 = vpop.f32.mrf.mxu0
    %212 = vmatprep.mubr.f32.mxu0 0.0
    %213 = vmatmul.mubr.f32.gmra.mxu0 %v133
    %v214 = vpop.f32.mrf.mxu0
    %v215 = vadd.f32 0.0, %v214
    %v216 = vpop.f32.mrf.mxu0
    %217 = vmatprep.mubr.f32.mxu0 0.0
    %218 = vmatmul.mubr.f32.gmra.mxu0 %v136
    %v219 = vpop.f32.mrf.mxu0
    %v220 = vadd.f32 0.0, %v219
    %v221 = vpop.f32.mrf.mxu0
    %222 = vdwg.mxu0
    %v224 = vsel %vm94, %v101, 0
    %v227 = vsel %vm94, %v102, 0
    %v230 = vsel %vm94, %v103, 0
    %v233 = vsel %vm94, %v104, 0
    %235 = vmatprep.subr.mxu0 0.0
    %236 = vmatpush1.msra.mxu0 0.0
    %237 = vmatprep.subr.mxu0 0.0
    %238 = vmatpush1.msra.mxu0 0.0
    %239 = vmatprep.subr.mxu0 0.0
    %240 = vmatpush1.msra.mxu0 0.0
    %241 = vmatprep.subr.mxu0 0.0
    %242 = vmatpush1.msra.mxu0 0.0
    %243 = vmatprep.subr.mxu0 0.0
    %244 = vmatpush1.msra.mxu0 0.0
    %245 = vmatprep.subr.mxu0 0.0
    %246 = vmatpush1.msra.mxu0 0.0
    %247 = vmatprep.subr.mxu0 0.0
    %248 = vmatpush1.msra.mxu0 0.0
    %249 = vmatprep.subr.mxu0 0.0
    %250 = vmatpush1.msra.mxu0 0.0
    %251 = vmatprep.subr.mxu0 0.0
    %252 = vmatpush1.msra.mxu0 %v112
    %253 = vmatprep.subr.mxu0 0.0
    %254 = vmatpush1.msra.mxu0 %v111
    %255 = vmatprep.subr.mxu0 0.0
    %256 = vmatpush1.msra.mxu0 %v110
    %257 = vmatprep.subr.mxu0 0.0
    %258 = vmatpush1.msra.mxu0 %v109
    %259 = vmatprep.subr.mxu0 0.0
    %260 = vmatpush1.msra.mxu0 %v108
    %261 = vmatprep.subr.mxu0 0.0
    %262 = vmatpush1.msra.mxu0 %v107
    %263 = vmatprep.subr.mxu0 0.0
    %264 = vmatpush1.msra.mxu0 %v106
    %265 = vmatprep.subr.mxu0 0.0
    %266 = vmatpush1.msra.mxu0 %v105
    %267 = vmatprep.subr.mxu0 0.0
    %268 = vmatpush2.msra.mxu0 0.0
    %269 = vmatprep.subr.mxu0 0.0
    %270 = vmatpush2.msra.mxu0 0.0
    %271 = vmatprep.subr.mxu0 0.0
    %272 = vmatpush2.msra.mxu0 0.0
    %273 = vmatprep.subr.mxu0 0.0
    %274 = vmatpush2.msra.mxu0 0.0
    %275 = vmatprep.subr.mxu0 0.0
    %276 = vmatpush2.msra.mxu0 0.0
    %277 = vmatprep.subr.mxu0 0.0
    %278 = vmatpush2.msra.mxu0 0.0
    %279 = vmatprep.subr.mxu0 0.0
    %280 = vmatpush2.msra.mxu0 0.0
    %281 = vmatprep.subr.mxu0 0.0
    %282 = vmatpush2.msra.mxu0 0.0
    %283 = vmatprep.subr.mxu0 0.0
    %284 = vmatpush2.msra.mxu0 0.0
    %285 = vmatprep.subr.mxu0 0.0
    %286 = vmatpush2.msra.mxu0 0.0
    %287 = vmatprep.subr.mxu0 0.0
    %288 = vmatpush2.msra.mxu0 0.0
    %289 = vmatprep.subr.mxu0 0.0
    %290 = vmatpush2.msra.mxu0 0.0
    %291 = vmatprep.subr.mxu0 0.0
    %292 = vmatpush2.msra.mxu0 0.0
    %293 = vmatprep.subr.mxu0 0.0
    %294 = vmatpush2.msra.mxu0 0.0
    %295 = vmatprep.subr.mxu0 0.0
    %296 = vmatpush2.msra.mxu0 0.0
    %297 = vmatprep.subr.mxu0 0.0
    %298 = vmatpush2.msra.mxu0 0.0
    %299 = vmatprep.mubr.f32.mxu0 0.0
    %300 = vmatmul.mubr.f32.gmra.mxu0 %v224
    %v301 = vpop.f32.mrf.mxu0
    %v302 = vadd.f32 %v205, %v301
    %v303 = vpop.f32.mrf.mxu0
    %304 = vmatprep.mubr.f32.mxu0 0.0
    %305 = vmatmul.mubr.f32.gmra.mxu0 %v227
    %v306 = vpop.f32.mrf.mxu0
    %v307 = vadd.f32 %v210, %v306
    %v308 = vpop.f32.mrf.mxu0
    %309 = vmatprep.mubr.f32.mxu0 0.0
    %310 = vmatmul.mubr.f32.gmra.mxu0 %v230
    %v311 = vpop.f32.mrf.mxu0
    %v312 = vadd.f32 %v215, %v311
    %v313 = vpop.f32.mrf.mxu0
    %314 = vmatprep.mubr.f32.mxu0 0.0
    %315 = vmatmul.mubr.f32.gmra.mxu0 %v233
    %v316 = vpop.f32.mrf.mxu0
    %v317 = vadd.f32 %v220, %v316
    %v318 = vpop.f32.mrf.mxu0
    %319 = vdwg.mxu0
    %v320 = vld [vmem:[#allocation2 + $0x2] sm:$0xff]
    %v321 = vld [vmem:[#allocation2 + $0xa] sm:$0xff]
    %v322 = vld [vmem:[#allocation2 + $0x1a] sm:$0xff]
    %v323 = vld [vmem:[#allocation2 + $0x22] sm:$0xff]
    %s324 = scalar_lea.vmem [#allocation7], 128
    %v325 = vld [vmem:[%s324] sm:$0xff]
    %v326 = vld [vmem:[%s324 + $0x8] sm:$0xff]
    %v327 = vld [vmem:[%s324 + $0x10] sm:$0xff]
    %v328 = vld [vmem:[%s324 + $0x18] sm:$0xff]
    %v329 = vld [vmem:[%s324 + $0x20] sm:$0xff]
    %v330 = vld [vmem:[%s324 + $0x28] sm:$0xff]
    %v331 = vld [vmem:[%s324 + $0x30] sm:$0xff]
    %v332 = vld [vmem:[%s324 + $0x38] sm:$0xff]
    %v334 = vsel %vm94, %v320, 0
    %v337 = vsel %vm94, %v321, 0
    %v340 = vsel %vm94, %v322, 0
    %v343 = vsel %vm94, %v323, 0
    %345 = vmatprep.subr.mxu0 0.0
    %346 = vmatpush1.msra.mxu0 0.0
    %347 = vmatprep.subr.mxu0 0.0
    %348 = vmatpush1.msra.mxu0 0.0
    %349 = vmatprep.subr.mxu0 0.0
    %350 = vmatpush1.msra.mxu0 0.0
    %351 = vmatprep.subr.mxu0 0.0
    %352 = vmatpush1.msra.mxu0 0.0
    %353 = vmatprep.subr.mxu0 0.0
    %354 = vmatpush1.msra.mxu0 0.0
    %355 = vmatprep.subr.mxu0 0.0
    %356 = vmatpush1.msra.mxu0 0.0
    %357 = vmatprep.subr.mxu0 0.0
    %358 = vmatpush1.msra.mxu0 0.0
    %359 = vmatprep.subr.mxu0 0.0
    %360 = vmatpush1.msra.mxu0 0.0
    %361 = vmatprep.subr.mxu0 0.0
    %362 = vmatpush1.msra.mxu0 %v332
    %363 = vmatprep.subr.mxu0 0.0
    %364 = vmatpush1.msra.mxu0 %v331
    %365 = vmatprep.subr.mxu0 0.0
    %366 = vmatpush1.msra.mxu0 %v330
    %367 = vmatprep.subr.mxu0 0.0
    %368 = vmatpush1.msra.mxu0 %v329
    %369 = vmatprep.subr.mxu0 0.0
    %370 = vmatpush1.msra.mxu0 %v328
    %371 = vmatprep.subr.mxu0 0.0
    %372 = vmatpush1.msra.mxu0 %v327
    %373 = vmatprep.subr.mxu0 0.0
    %374 = vmatpush1.msra.mxu0 %v326
    %375 = vmatprep.subr.mxu0 0.0
    %376 = vmatpush1.msra.mxu0 %v325
    %377 = vmatprep.subr.mxu0 0.0
    %378 = vmatpush2.msra.mxu0 0.0
    %379 = vmatprep.subr.mxu0 0.0
    %380 = vmatpush2.msra.mxu0 0.0
    %381 = vmatprep.subr.mxu0 0.0
    %382 = vmatpush2.msra.mxu0 0.0
    %383 = vmatprep.subr.mxu0 0.0
    %384 = vmatpush2.msra.mxu0 0.0
    %385 = vmatprep.subr.mxu0 0.0
    %386 = vmatpush2.msra.mxu0 0.0
    %387 = vmatprep.subr.mxu0 0.0
    %388 = vmatpush2.msra.mxu0 0.0
    %389 = vmatprep.subr.mxu0 0.0
    %390 = vmatpush2.msra.mxu0 0.0
    %391 = vmatprep.subr.mxu0 0.0
    %392 = vmatpush2.msra.mxu0 0.0
    %393 = vmatprep.subr.mxu0 0.0
    %394 = vmatpush2.msra.mxu0 0.0
    %395 = vmatprep.subr.mxu0 0.0
    %396 = vmatpush2.msra.mxu0 0.0
    %397 = vmatprep.subr.mxu0 0.0
    %398 = vmatpush2.msra.mxu0 0.0
    %399 = vmatprep.subr.mxu0 0.0
    %400 = vmatpush2.msra.mxu0 0.0
    %401 = vmatprep.subr.mxu0 0.0
    %402 = vmatpush2.msra.mxu0 0.0
    %403 = vmatprep.subr.mxu0 0.0
    %404 = vmatpush2.msra.mxu0 0.0
    %405 = vmatprep.subr.mxu0 0.0
    %406 = vmatpush2.msra.mxu0 0.0
    %407 = vmatprep.subr.mxu0 0.0
    %408 = vmatpush2.msra.mxu0 0.0
    %409 = vmatprep.mubr.f32.mxu0 0.0
    %410 = vmatmul.mubr.f32.gmra.mxu0 %v334
    %v411 = vpop.f32.mrf.mxu0
    %v412 = vadd.f32 0.0, %v411
    %v413 = vpop.f32.mrf.mxu0
    %414 = vmatprep.mubr.f32.mxu0 0.0
    %415 = vmatmul.mubr.f32.gmra.mxu0 %v337
    %v416 = vpop.f32.mrf.mxu0
    %v417 = vadd.f32 0.0, %v416
    %v418 = vpop.f32.mrf.mxu0
    %419 = vmatprep.mubr.f32.mxu0 0.0
    %420 = vmatmul.mubr.f32.gmra.mxu0 %v340
    %v421 = vpop.f32.mrf.mxu0
    %v422 = vadd.f32 0.0, %v421
    %v423 = vpop.f32.mrf.mxu0
    %424 = vmatprep.mubr.f32.mxu0 0.0
    %425 = vmatmul.mubr.f32.gmra.mxu0 %v343
    %v426 = vpop.f32.mrf.mxu0
    %v427 = vadd.f32 0.0, %v426
    %v428 = vpop.f32.mrf.mxu0
    %429 = vdwg.mxu0
    %v430 = vadd.f32 %v302, %v412
    %v431 = vadd.f32 %v307, %v417
    %v432 = vadd.f32 %v312, %v422
    %v433 = vadd.f32 %v317, %v427
    %v434 = vadd.f32 %v430, %v431
    %v435 = vadd.f32 %v434, %v432
    %v436 = vadd.f32 %v435, %v433
    %v437 = vrot.slane %v436, 4
    %v438 = vadd.f32 %v436, %v437
    %v439 = vrot.slane %v438, 2
    %v440 = vadd.f32 %v438, %v439
    %v441 = vrot.slane %v440, 1
    %v442 = vadd.f32 %v440, %v441
    %v443 = vld [vmem:[#allocation10] sm:$0xff]
    %v444 = vld [vmem:[#allocation10 + $0x8] sm:$0xff]
    %v445 = vld [vmem:[#allocation10 + $0x10] sm:$0xff]
    %v446 = vld [vmem:[#allocation10 + $0x18] sm:$0xff]
    %v447 = vld [vmem:[#allocation10 + $0x20] sm:$0xff]
    %v448 = vld [vmem:[#allocation10 + $0x28] sm:$0xff]
    %v449 = vld [vmem:[#allocation10 + $0x30] sm:$0xff]
    %v450 = vld [vmem:[#allocation10 + $0x38] sm:$0xff]
    %v451 = vld [vmem:[#allocation10 + $0x40] sm:$0xff]
    %v452 = vld [vmem:[#allocation10 + $0x48] sm:$0xff]
    %v453 = vld [vmem:[#allocation10 + $0x50] sm:$0xff]
    %v454 = vld [vmem:[#allocation10 + $0x58] sm:$0xff]
    %v455 = vld [vmem:[#allocation10 + $0x60] sm:$0xff]
    %v456 = vld [vmem:[#allocation10 + $0x68] sm:$0xff]
    %v457 = vld [vmem:[#allocation10 + $0x70] sm:$0xff]
    %v458 = vld [vmem:[#allocation10 + $0x78] sm:$0xff]
    %459 = vmatprep.subr.mxu0 0.0
    %460 = vmatpush1.msra.mxu0 %v458
    %461 = vmatprep.subr.mxu0 0.0
    %462 = vmatpush1.msra.mxu0 %v457
    %463 = vmatprep.subr.mxu0 0.0
    %464 = vmatpush1.msra.mxu0 %v456
    %465 = vmatprep.subr.mxu0 0.0
    %466 = vmatpush1.msra.mxu0 %v455
    %467 = vmatprep.subr.mxu0 0.0
    %468 = vmatpush1.msra.mxu0 %v454
    %469 = vmatprep.subr.mxu0 0.0
    %470 = vmatpush1.msra.mxu0 %v453
    %471 = vmatprep.subr.mxu0 0.0
    %472 = vmatpush1.msra.mxu0 %v452
    %473 = vmatprep.subr.mxu0 0.0
    %474 = vmatpush1.msra.mxu0 %v451
    %475 = vmatprep.subr.mxu0 0.0
    %476 = vmatpush1.msra.mxu0 %v450
    %477 = vmatprep.subr.mxu0 0.0
    %478 = vmatpush1.msra.mxu0 %v449
    %479 = vmatprep.subr.mxu0 0.0
    %480 = vmatpush1.msra.mxu0 %v448
    %481 = vmatprep.subr.mxu0 0.0
    %482 = vmatpush1.msra.mxu0 %v447
    %483 = vmatprep.subr.mxu0 0.0
    %484 = vmatpush1.msra.mxu0 %v446
    %485 = vmatprep.subr.mxu0 0.0
    %486 = vmatpush1.msra.mxu0 %v445
    %487 = vmatprep.subr.mxu0 0.0
    %488 = vmatpush1.msra.mxu0 %v444
    %489 = vmatprep.subr.mxu0 0.0
    %490 = vmatpush1.msra.mxu0 %v443
    %491 = vmatprep.subr.mxu0 0.0
    %492 = vmatpush2.msra.mxu0 0.0
    %493 = vmatprep.subr.mxu0 0.0
    %494 = vmatpush2.msra.mxu0 0.0
    %495 = vmatprep.subr.mxu0 0.0
    %496 = vmatpush2.msra.mxu0 0.0
    %497 = vmatprep.subr.mxu0 0.0
    %498 = vmatpush2.msra.mxu0 0.0
    %499 = vmatprep.subr.mxu0 0.0
    %500 = vmatpush2.msra.mxu0 0.0
    %501 = vmatprep.subr.mxu0 0.0
    %502 = vmatpush2.msra.mxu0 0.0
    %503 = vmatprep.subr.mxu0 0.0
    %504 = vmatpush2.msra.mxu0 0.0
    %505 = vmatprep.subr.mxu0 0.0
    %506 = vmatpush2.msra.mxu0 0.0
    %507 = vmatprep.subr.mxu0 0.0
    %508 = vmatpush2.msra.mxu0 0.0
    %509 = vmatprep.subr.mxu0 0.0
    %510 = vmatpush2.msra.mxu0 0.0
    %511 = vmatprep.subr.mxu0 0.0
    %512 = vmatpush2.msra.mxu0 0.0
    %513 = vmatprep.subr.mxu0 0.0
    %514 = vmatpush2.msra.mxu0 0.0
    %515 = vmatprep.subr.mxu0 0.0
    %516 = vmatpush2.msra.mxu0 0.0
    %517 = vmatprep.subr.mxu0 0.0
    %518 = vmatpush2.msra.mxu0 0.0
    %519 = vmatprep.subr.mxu0 0.0
    %520 = vmatpush2.msra.mxu0 0.0
    %521 = vmatprep.subr.mxu0 0.0
    %522 = vmatpush2.msra.mxu0 0.0
    %523 = vmatprep.mubr.f32.mxu0 0.0
    %524 = vmatmul.mubr.f32.gmra.mxu0 %v442
    %v525 = vpop.f32.mrf.mxu0
    %v526 = vadd.f32 0.0, %v525
    %v527 = vpop.f32.mrf.mxu0
    %528 = vdwg.mxu0
    %v529 = vrcp.pop 512.0
    %v530 = vmul.f32 %v526, %v529
    %v531 = vlaneseq
    %v532 = vshrl.u32 %v531, 7
    %v533 = vsub.s32 0, %v532
    %v534 = vrot.slane %v530, %v533
    %v535 = vsub.f32 %v430, %v534
    %v536 = vsub.f32 %v431, %v534
    %v537 = vsub.f32 %v432, %v534
    %v538 = vsub.f32 %v433, %v534
    %v539 = vmul.f32 %v535, %v535
    %v540 = vmul.f32 %v536, %v536
    %v541 = vmul.f32 %v537, %v537
    %v542 = vmul.f32 %v538, %v538
    %v543 = vadd.f32 %v539, %v540
    %v544 = vadd.f32 %v543, %v541
    %v545 = vadd.f32 %v544, %v542
    %v546 = vrot.slane %v545, 4
    %v547 = vadd.f32 %v545, %v546
    %v548 = vrot.slane %v547, 2
    %v549 = vadd.f32 %v547, %v548
    %v550 = vrot.slane %v549, 1
    %v551 = vadd.f32 %v549, %v550
    %552 = vmatprep.subr.mxu0 0.0
    %553 = vmatpush1.msra.mxu0 %v458
    %554 = vmatprep.subr.mxu0 0.0
    %555 = vmatpush1.msra.mxu0 %v457
    %556 = vmatprep.subr.mxu0 0.0
    %557 = vmatpush1.msra.mxu0 %v456
    %558 = vmatprep.subr.mxu0 0.0
    %559 = vmatpush1.msra.mxu0 %v455
    %560 = vmatprep.subr.mxu0 0.0
    %561 = vmatpush1.msra.mxu0 %v454
    %562 = vmatprep.subr.mxu0 0.0
    %563 = vmatpush1.msra.mxu0 %v453
    %564 = vmatprep.subr.mxu0 0.0
    %565 = vmatpush1.msra.mxu0 %v452
    %566 = vmatprep.subr.mxu0 0.0
    %567 = vmatpush1.msra.mxu0 %v451
    %568 = vmatprep.subr.mxu0 0.0
    %569 = vmatpush1.msra.mxu0 %v450
    %570 = vmatprep.subr.mxu0 0.0
    %571 = vmatpush1.msra.mxu0 %v449
    %572 = vmatprep.subr.mxu0 0.0
    %573 = vmatpush1.msra.mxu0 %v448
    %574 = vmatprep.subr.mxu0 0.0
    %575 = vmatpush1.msra.mxu0 %v447
    %576 = vmatprep.subr.mxu0 0.0
    %577 = vmatpush1.msra.mxu0 %v446
    %578 = vmatprep.subr.mxu0 0.0
    %579 = vmatpush1.msra.mxu0 %v445
    %580 = vmatprep.subr.mxu0 0.0
    %581 = vmatpush1.msra.mxu0 %v444
    %582 = vmatprep.subr.mxu0 0.0
    %583 = vmatpush1.msra.mxu0 %v443
    %584 = vmatprep.subr.mxu0 0.0
    %585 = vmatpush2.msra.mxu0 0.0
    %586 = vmatprep.subr.mxu0 0.0
    %587 = vmatpush2.msra.mxu0 0.0
    %588 = vmatprep.subr.mxu0 0.0
    %589 = vmatpush2.msra.mxu0 0.0
    %590 = vmatprep.subr.mxu0 0.0
    %591 = vmatpush2.msra.mxu0 0.0
    %592 = vmatprep.subr.mxu0 0.0
    %593 = vmatpush2.msra.mxu0 0.0
    %594 = vmatprep.subr.mxu0 0.0
    %595 = vmatpush2.msra.mxu0 0.0
    %596 = vmatprep.subr.mxu0 0.0
    %597 = vmatpush2.msra.mxu0 0.0
    %598 = vmatprep.subr.mxu0 0.0
    %599 = vmatpush2.msra.mxu0 0.0
    %600 = vmatprep.subr.mxu0 0.0
    %601 = vmatpush2.msra.mxu0 0.0
    %602 = vmatprep.subr.mxu0 0.0
    %603 = vmatpush2.msra.mxu0 0.0
    %604 = vmatprep.subr.mxu0 0.0
    %605 = vmatpush2.msra.mxu0 0.0
    %606 = vmatprep.subr.mxu0 0.0
    %607 = vmatpush2.msra.mxu0 0.0
    %608 = vmatprep.subr.mxu0 0.0
    %609 = vmatpush2.msra.mxu0 0.0
    %610 = vmatprep.subr.mxu0 0.0
    %611 = vmatpush2.msra.mxu0 0.0
    %612 = vmatprep.subr.mxu0 0.0
    %613 = vmatpush2.msra.mxu0 0.0
    %614 = vmatprep.subr.mxu0 0.0
    %615 = vmatpush2.msra.mxu0 0.0
    %616 = vmatprep.mubr.f32.mxu0 0.0
    %617 = vmatmul.mubr.f32.gmra.mxu0 %v551
    %v618 = vpop.f32.mrf.mxu0
    %v619 = vadd.f32 0.0, %v618
    %v620 = vpop.f32.mrf.mxu0
    %621 = vdwg.mxu0
    %v622 = vmul.f32 %v619, %v529
    %v623 = vadd.f32 %v622, 1e-05
    %v624 = vrsqrt.pop %v623
    %v625 = vmul.f32 %v99, %v624
    %v627 = vlaneseq
    %v628 = vshrl.u32 %v627, 7
    %v629 = vsub.s32 0, %v628
    %v630 = vrot.slane %v625, %v629
    %v632 = vmul.f32 %v535, %v630
    %v633 = vmul.f32 %v536, %v630
    %v634 = vmul.f32 %v537, %v630
    %v635 = vmul.f32 %v538, %v630
    %v637 = vlaneseq
    %v638 = vshrl.u32 %v637, 7
    %v639 = vsub.s32 0, %v638
    %v640 = vrot.slane %v100, %v639
    %v642 = vadd.f32 %v632, %v640
    %v643 = vadd.f32 %v633, %v640
    %v644 = vadd.f32 %v634, %v640
    %v645 = vadd.f32 %v635, %v640
    %v646 = vmax.f32 %v642, 0.0
    %v647 = vmax.f32 %v643, 0.0
    %v648 = vmax.f32 %v644, 0.0
    %v649 = vmax.f32 %v645, 0.0
    %650 = vst [vmem:[#allocation3] sm:$0x1] 0.0
    %651 = vst [vmem:[#allocation3 + $0x18] sm:$0x1] 0.0
    %652 = vst [vmem:[#allocation3 + $0x11] sm:$0x1] 0.0
    %653 = vst [vmem:[#allocation3 + $0x29] sm:$0x1] 0.0
    %654 = vst [vmem:[#allocation3 + $0x1] sm:$0xff] %v646
    %655 = vst [vmem:[#allocation3 + $0x9] sm:$0xff] %v647
    %656 = vst [vmem:[#allocation3 + $0x19] sm:$0xff] %v648
    %657 = vst [vmem:[#allocation3 + $0x21] sm:$0xff] %v649
    %v658 = vld [vmem:[%s5] sm:$0x1]
    %v659 = vld [vmem:[%s6] sm:$0x1]
    %v660 = vld [vmem:[#allocation3] sm:$0xff]
    %v661 = vld [vmem:[#allocation3 + $0x8] sm:$0xff]
    %v662 = vld [vmem:[#allocation3 + $0x18] sm:$0xff]
    %v663 = vld [vmem:[#allocation3 + $0x20] sm:$0xff]
    %v664 = vld [vmem:[#allocation9] sm:$0xff]
    %v665 = vld [vmem:[#allocation9 + $0x8] sm:$0xff]
    %v666 = vld [vmem:[#allocation9 + $0x10] sm:$0xff]
    %v667 = vld [vmem:[#allocation9 + $0x18] sm:$0xff]
    %v668 = vld [vmem:[#allocation9 + $0x20] sm:$0xff]
    %v669 = vld [vmem:[#allocation9 + $0x28] sm:$0xff]
    %v670 = vld [vmem:[#allocation9 + $0x30] sm:$0xff]
    %v671 = vld [vmem:[#allocation9 + $0x38] sm:$0xff]
    %v672 = vld [vmem:[#allocation9 + $0x40] sm:$0xff]
    %v673 = vld [vmem:[#allocation9 + $0x48] sm:$0xff]
    %v674 = vld [vmem:[#allocation9 + $0x50] sm:$0xff]
    %v675 = vld [vmem:[#allocation9 + $0x58] sm:$0xff]
    %v676 = vld [vmem:[#allocation9 + $0x60] sm:$0xff]
    %v677 = vld [vmem:[#allocation9 + $0x68] sm:$0xff]
    %v678 = vld [vmem:[#allocation9 + $0x70] sm:$0xff]
    %v679 = vld [vmem:[#allocation9 + $0x78] sm:$0xff]
    %v680 = vld [vmem:[#allocation3 + $0x1] sm:$0xff]
    %v681 = vld [vmem:[#allocation3 + $0x9] sm:$0xff]
    %v682 = vld [vmem:[#allocation3 + $0x19] sm:$0xff]
    %v683 = vld [vmem:[#allocation3 + $0x21] sm:$0xff]
    %s684 = scalar_lea.vmem [#allocation9], 128
    %v685 = vld [vmem:[%s684] sm:$0xff]
    %v686 = vld [vmem:[%s684 + $0x8] sm:$0xff]
    %v687 = vld [vmem:[%s684 + $0x10] sm:$0xff]
    %v688 = vld [vmem:[%s684 + $0x18] sm:$0xff]
    %v689 = vld [vmem:[%s684 + $0x20] sm:$0xff]
    %v690 = vld [vmem:[%s684 + $0x28] sm:$0xff]
    %v691 = vld [vmem:[%s684 + $0x30] sm:$0xff]
    %v692 = vld [vmem:[%s684 + $0x38] sm:$0xff]
    %v693 = vld [vmem:[%s684 + $0x40] sm:$0xff]
    %v694 = vld [vmem:[%s684 + $0x48] sm:$0xff]
    %v695 = vld [vmem:[%s684 + $0x50] sm:$0xff]
    %v696 = vld [vmem:[%s684 + $0x58] sm:$0xff]
    %v697 = vld [vmem:[%s684 + $0x60] sm:$0xff]
    %v698 = vld [vmem:[%s684 + $0x68] sm:$0xff]
    %v699 = vld [vmem:[%s684 + $0x70] sm:$0xff]
    %v700 = vld [vmem:[%s684 + $0x78] sm:$0xff]
    %701 = vmatprep.subr.mxu0 0.0
    %702 = vmatpush1.msra.mxu0 %v700
    %703 = vmatprep.subr.mxu0 0.0
    %704 = vmatpush1.msra.mxu0 %v699
    %705 = vmatprep.subr.mxu0 0.0
    %706 = vmatpush1.msra.mxu0 %v698
    %707 = vmatprep.subr.mxu0 0.0
    %708 = vmatpush1.msra.mxu0 %v697
    %709 = vmatprep.subr.mxu0 0.0
    %710 = vmatpush1.msra.mxu0 %v696
    %711 = vmatprep.subr.mxu0 0.0
    %712 = vmatpush1.msra.mxu0 %v695
    %713 = vmatprep.subr.mxu0 0.0
    %714 = vmatpush1.msra.mxu0 %v694
    %715 = vmatprep.subr.mxu0 0.0
    %716 = vmatpush1.msra.mxu0 %v693
    %717 = vmatprep.subr.mxu0 0.0
    %718 = vmatpush1.msra.mxu0 %v692
    %719 = vmatprep.subr.mxu0 0.0
    %720 = vmatpush1.msra.mxu0 %v691
    %721 = vmatprep.subr.mxu0 0.0
    %722 = vmatpush1.msra.mxu0 %v690
    %723 = vmatprep.subr.mxu0 0.0
    %724 = vmatpush1.msra.mxu0 %v689
    %725 = vmatprep.subr.mxu0 0.0
    %726 = vmatpush1.msra.mxu0 %v688
    %727 = vmatprep.subr.mxu0 0.0
    %728 = vmatpush1.msra.mxu0 %v687
    %729 = vmatprep.subr.mxu0 0.0
    %730 = vmatpush1.msra.mxu0 %v686
    %731 = vmatprep.subr.mxu0 0.0
    %732 = vmatpush1.msra.mxu0 %v685
    %733 = vmatprep.subr.mxu0 0.0
    %734 = vmatpush2.msra.mxu0 0.0
    %735 = vmatprep.subr.mxu0 0.0
    %736 = vmatpush2.msra.mxu0 0.0
    %737 = vmatprep.subr.mxu0 0.0
    %738 = vmatpush2.msra.mxu0 0.0
    %739 = vmatprep.subr.mxu0 0.0
    %740 = vmatpush2.msra.mxu0 0.0
    %741 = vmatprep.subr.mxu0 0.0
    %742 = vmatpush2.msra.mxu0 0.0
    %743 = vmatprep.subr.mxu0 0.0
    %744 = vmatpush2.msra.mxu0 0.0
    %745 = vmatprep.subr.mxu0 0.0
    %746 = vmatpush2.msra.mxu0 0.0
    %747 = vmatprep.subr.mxu0 0.0
    %748 = vmatpush2.msra.mxu0 0.0
    %749 = vmatprep.subr.mxu0 0.0
    %750 = vmatpush2.msra.mxu0 0.0
    %751 = vmatprep.subr.mxu0 0.0
    %752 = vmatpush2.msra.mxu0 0.0
    %753 = vmatprep.subr.mxu0 0.0
    %754 = vmatpush2.msra.mxu0 0.0
    %755 = vmatprep.subr.mxu0 0.0
    %756 = vmatpush2.msra.mxu0 0.0
    %757 = vmatprep.subr.mxu0 0.0
    %758 = vmatpush2.msra.mxu0 0.0
    %759 = vmatprep.subr.mxu0 0.0
    %760 = vmatpush2.msra.mxu0 0.0
    %761 = vmatprep.subr.mxu0 0.0
    %762 = vmatpush2.msra.mxu0 0.0
    %763 = vmatprep.subr.mxu0 0.0
    %764 = vmatpush2.msra.mxu0 0.0
    %765 = vmatprep.mubr.f32.mxu0 0.0
    %766 = vmatmul.mubr.f32.gmra.mxu0 %v680
    %v767 = vpop.f32.mrf.mxu0
    %v768 = vadd.f32 0.0, %v767
    %v769 = vpop.f32.mrf.mxu0
    %770 = vmatprep.mubr.f32.mxu0 0.0
    %771 = vmatmul.mubr.f32.gmra.mxu0 %v681
    %v772 = vpop.f32.mrf.mxu0
    %v773 = vadd.f32 0.0, %v772
    %v774 = vpop.f32.mrf.mxu0
    %775 = vmatprep.mubr.f32.mxu0 0.0
    %776 = vmatmul.mubr.f32.gmra.mxu0 %v682
    %v777 = vpop.f32.mrf.mxu0
    %v778 = vadd.f32 0.0, %v777
    %v779 = vpop.f32.mrf.mxu0
    %780 = vmatprep.mubr.f32.mxu0 0.0
    %781 = vmatmul.mubr.f32.gmra.mxu0 %v683
    %v782 = vpop.f32.mrf.mxu0
    %v783 = vadd.f32 0.0, %v782
    %v784 = vpop.f32.mrf.mxu0
    %785 = vdwg.mxu0
    %786 = vmatprep.subr.mxu0 0.0
    %787 = vmatpush1.msra.mxu0 %v679
    %788 = vmatprep.subr.mxu0 0.0
    %789 = vmatpush1.msra.mxu0 %v678
    %790 = vmatprep.subr.mxu0 0.0
    %791 = vmatpush1.msra.mxu0 %v677
    %792 = vmatprep.subr.mxu0 0.0
    %793 = vmatpush1.msra.mxu0 %v676
    %794 = vmatprep.subr.mxu0 0.0
    %795 = vmatpush1.msra.mxu0 %v675
    %796 = vmatprep.subr.mxu0 0.0
    %797 = vmatpush1.msra.mxu0 %v674
    %798 = vmatprep.subr.mxu0 0.0
    %799 = vmatpush1.msra.mxu0 %v673
    %800 = vmatprep.subr.mxu0 0.0
    %801 = vmatpush1.msra.mxu0 %v672
    %802 = vmatprep.subr.mxu0 0.0
    %803 = vmatpush1.msra.mxu0 %v671
    %804 = vmatprep.subr.mxu0 0.0
    %805 = vmatpush1.msra.mxu0 %v670
    %806 = vmatprep.subr.mxu0 0.0
    %807 = vmatpush1.msra.mxu0 %v669
    %808 = vmatprep.subr.mxu0 0.0
    %809 = vmatpush1.msra.mxu0 %v668
    %810 = vmatprep.subr.mxu0 0.0
    %811 = vmatpush1.msra.mxu0 %v667
    %812 = vmatprep.subr.mxu0 0.0
    %813 = vmatpush1.msra.mxu0 %v666
    %814 = vmatprep.subr.mxu0 0.0
    %815 = vmatpush1.msra.mxu0 %v665
    %816 = vmatprep.subr.mxu0 0.0
    %817 = vmatpush1.msra.mxu0 %v664
    %818 = vmatprep.subr.mxu0 0.0
    %819 = vmatpush2.msra.mxu0 0.0
    %820 = vmatprep.subr.mxu0 0.0
    %821 = vmatpush2.msra.mxu0 0.0
    %822 = vmatprep.subr.mxu0 0.0
    %823 = vmatpush2.msra.mxu0 0.0
    %824 = vmatprep.subr.mxu0 0.0
    %825 = vmatpush2.msra.mxu0 0.0
    %826 = vmatprep.subr.mxu0 0.0
    %827 = vmatpush2.msra.mxu0 0.0
    %828 = vmatprep.subr.mxu0 0.0
    %829 = vmatpush2.msra.mxu0 0.0
    %830 = vmatprep.subr.mxu0 0.0
    %831 = vmatpush2.msra.mxu0 0.0
    %832 = vmatprep.subr.mxu0 0.0
    %833 = vmatpush2.msra.mxu0 0.0
    %834 = vmatprep.subr.mxu0 0.0
    %835 = vmatpush2.msra.mxu0 0.0
    %836 = vmatprep.subr.mxu0 0.0
    %837 = vmatpush2.msra.mxu0 0.0
    %838 = vmatprep.subr.mxu0 0.0
    %839 = vmatpush2.msra.mxu0 0.0
    %840 = vmatprep.subr.mxu0 0.0
    %841 = vmatpush2.msra.mxu0 0.0
    %842 = vmatprep.subr.mxu0 0.0
    %843 = vmatpush2.msra.mxu0 0.0
    %844 = vmatprep.subr.mxu0 0.0
    %845 = vmatpush2.msra.mxu0 0.0
    %846 = vmatprep.subr.mxu0 0.0
    %847 = vmatpush2.msra.mxu0 0.0
    %848 = vmatprep.subr.mxu0 0.0
    %849 = vmatpush2.msra.mxu0 0.0
    %850 = vmatprep.mubr.f32.mxu0 0.0
    %851 = vmatmul.mubr.f32.gmra.mxu0 %v660
    %v852 = vpop.f32.mrf.mxu0
    %v853 = vadd.f32 %v768, %v852
    %v854 = vpop.f32.mrf.mxu0
    %855 = vmatprep.mubr.f32.mxu0 0.0
    %856 = vmatmul.mubr.f32.gmra.mxu0 %v661
    %v857 = vpop.f32.mrf.mxu0
    %v858 = vadd.f32 %v773, %v857
    %v859 = vpop.f32.mrf.mxu0
    %860 = vmatprep.mubr.f32.mxu0 0.0
    %861 = vmatmul.mubr.f32.gmra.mxu0 %v662
    %v862 = vpop.f32.mrf.mxu0
    %v863 = vadd.f32 %v778, %v862
    %v864 = vpop.f32.mrf.mxu0
    %865 = vmatprep.mubr.f32.mxu0 0.0
    %866 = vmatmul.mubr.f32.gmra.mxu0 %v663
    %v867 = vpop.f32.mrf.mxu0
    %v868 = vadd.f32 %v783, %v867
    %v869 = vpop.f32.mrf.mxu0
    %870 = vdwg.mxu0
    %v871 = vld [vmem:[#allocation3 + $0x2] sm:$0xff]
    %v872 = vld [vmem:[#allocation3 + $0xa] sm:$0xff]
    %v873 = vld [vmem:[#allocation3 + $0x1a] sm:$0xff]
    %v874 = vld [vmem:[#allocation3 + $0x22] sm:$0xff]
    %s875 = scalar_lea.vmem [#allocation9], 256
    %v876 = vld [vmem:[%s875] sm:$0xff]
    %v877 = vld [vmem:[%s875 + $0x8] sm:$0xff]
    %v878 = vld [vmem:[%s875 + $0x10] sm:$0xff]
    %v879 = vld [vmem:[%s875 + $0x18] sm:$0xff]
    %v880 = vld [vmem:[%s875 + $0x20] sm:$0xff]
    %v881 = vld [vmem:[%s875 + $0x28] sm:$0xff]
    %v882 = vld [vmem:[%s875 + $0x30] sm:$0xff]
    %v883 = vld [vmem:[%s875 + $0x38] sm:$0xff]
    %v884 = vld [vmem:[%s875 + $0x40] sm:$0xff]
    %v885 = vld [vmem:[%s875 + $0x48] sm:$0xff]
    %v886 = vld [vmem:[%s875 + $0x50] sm:$0xff]
    %v887 = vld [vmem:[%s875 + $0x58] sm:$0xff]
    %v888 = vld [vmem:[%s875 + $0x60] sm:$0xff]
    %v889 = vld [vmem:[%s875 + $0x68] sm:$0xff]
    %v890 = vld [vmem:[%s875 + $0x70] sm:$0xff]
    %v891 = vld [vmem:[%s875 + $0x78] sm:$0xff]
    %892 = vmatprep.subr.mxu0 0.0
    %893 = vmatpush1.msra.mxu0 %v891
    %894 = vmatprep.subr.mxu0 0.0
    %895 = vmatpush1.msra.mxu0 %v890
    %896 = vmatprep.subr.mxu0 0.0
    %897 = vmatpush1.msra.mxu0 %v889
    %898 = vmatprep.subr.mxu0 0.0
    %899 = vmatpush1.msra.mxu0 %v888
    %900 = vmatprep.subr.mxu0 0.0
    %901 = vmatpush1.msra.mxu0 %v887
    %902 = vmatprep.subr.mxu0 0.0
    %903 = vmatpush1.msra.mxu0 %v886
    %904 = vmatprep.subr.mxu0 0.0
    %905 = vmatpush1.msra.mxu0 %v885
    %906 = vmatprep.subr.mxu0 0.0
    %907 = vmatpush1.msra.mxu0 %v884
    %908 = vmatprep.subr.mxu0 0.0
    %909 = vmatpush1.msra.mxu0 %v883
    %910 = vmatprep.subr.mxu0 0.0
    %911 = vmatpush1.msra.mxu0 %v882
    %912 = vmatprep.subr.mxu0 0.0
    %913 = vmatpush1.msra.mxu0 %v881
    %914 = vmatprep.subr.mxu0 0.0
    %915 = vmatpush1.msra.mxu0 %v880
    %916 = vmatprep.subr.mxu0 0.0
    %917 = vmatpush1.msra.mxu0 %v879
    %918 = vmatprep.subr.mxu0 0.0
    %919 = vmatpush1.msra.mxu0 %v878
    %920 = vmatprep.subr.mxu0 0.0
    %921 = vmatpush1.msra.mxu0 %v877
    %922 = vmatprep.subr.mxu0 0.0
    %923 = vmatpush1.msra.mxu0 %v876
    %924 = vmatprep.subr.mxu0 0.0
    %925 = vmatpush2.msra.mxu0 0.0
    %926 = vmatprep.subr.mxu0 0.0
    %927 = vmatpush2.msra.mxu0 0.0
    %928 = vmatprep.subr.mxu0 0.0
    %929 = vmatpush2.msra.mxu0 0.0
    %930 = vmatprep.subr.mxu0 0.0
    %931 = vmatpush2.msra.mxu0 0.0
    %932 = vmatprep.subr.mxu0 0.0
    %933 = vmatpush2.msra.mxu0 0.0
    %934 = vmatprep.subr.mxu0 0.0
    %935 = vmatpush2.msra.mxu0 0.0
    %936 = vmatprep.subr.mxu0 0.0
    %937 = vmatpush2.msra.mxu0 0.0
    %938 = vmatprep.subr.mxu0 0.0
    %939 = vmatpush2.msra.mxu0 0.0
    %940 = vmatprep.subr.mxu0 0.0
    %941 = vmatpush2.msra.mxu0 0.0
    %942 = vmatprep.subr.mxu0 0.0
    %943 = vmatpush2.msra.mxu0 0.0
    %944 = vmatprep.subr.mxu0 0.0
    %945 = vmatpush2.msra.mxu0 0.0
    %946 = vmatprep.subr.mxu0 0.0
    %947 = vmatpush2.msra.mxu0 0.0
    %948 = vmatprep.subr.mxu0 0.0
    %949 = vmatpush2.msra.mxu0 0.0
    %950 = vmatprep.subr.mxu0 0.0
    %951 = vmatpush2.msra.mxu0 0.0
    %952 = vmatprep.subr.mxu0 0.0
    %953 = vmatpush2.msra.mxu0 0.0
    %954 = vmatprep.subr.mxu0 0.0
    %955 = vmatpush2.msra.mxu0 0.0
    %956 = vmatprep.mubr.f32.mxu0 0.0
    %957 = vmatmul.mubr.f32.gmra.mxu0 %v871
    %v958 = vpop.f32.mrf.mxu0
    %v959 = vadd.f32 0.0, %v958
    %v960 = vpop.f32.mrf.mxu0
    %961 = vmatprep.mubr.f32.mxu0 0.0
    %962 = vmatmul.mubr.f32.gmra.mxu0 %v872
    %v963 = vpop.f32.mrf.mxu0
    %v964 = vadd.f32 0.0, %v963
    %v965 = vpop.f32.mrf.mxu0
    %966 = vmatprep.mubr.f32.mxu0 0.0
    %967 = vmatmul.mubr.f32.gmra.mxu0 %v873
    %v968 = vpop.f32.mrf.mxu0
    %v969 = vadd.f32 0.0, %v968
    %v970 = vpop.f32.mrf.mxu0
    %971 = vmatprep.mubr.f32.mxu0 0.0
    %972 = vmatmul.mubr.f32.gmra.mxu0 %v874
    %v973 = vpop.f32.mrf.mxu0
    %v974 = vadd.f32 0.0, %v973
    %v975 = vpop.f32.mrf.mxu0
    %976 = vdwg.mxu0
    %v977 = vadd.f32 %v853, %v959
    %v978 = vadd.f32 %v858, %v964
    %v979 = vadd.f32 %v863, %v969
    %v980 = vadd.f32 %v868, %v974
    %v981 = vadd.f32 %v977, %v978
    %v982 = vadd.f32 %v981, %v979
    %v983 = vadd.f32 %v982, %v980
    %v984 = vrot.slane %v983, 4
    %v985 = vadd.f32 %v983, %v984
    %v986 = vrot.slane %v985, 2
    %v987 = vadd.f32 %v985, %v986
    %v988 = vrot.slane %v987, 1
    %v989 = vadd.f32 %v987, %v988
    %v990 = vld [vmem:[#allocation10] sm:$0xff]
    %v991 = vld [vmem:[#allocation10 + $0x8] sm:$0xff]
    %v992 = vld [vmem:[#allocation10 + $0x10] sm:$0xff]
    %v993 = vld [vmem:[#allocation10 + $0x18] sm:$0xff]
    %v994 = vld [vmem:[#allocation10 + $0x20] sm:$0xff]
    %v995 = vld [vmem:[#allocation10 + $0x28] sm:$0xff]
    %v996 = vld [vmem:[#allocation10 + $0x30] sm:$0xff]
    %v997 = vld [vmem:[#allocation10 + $0x38] sm:$0xff]
    %v998 = vld [vmem:[#allocation10 + $0x40] sm:$0xff]
    %v999 = vld [vmem:[#allocation10 + $0x48] sm:$0xff]
    %v1000 = vld [vmem:[#allocation10 + $0x50] sm:$0xff]
    %v1001 = vld [vmem:[#allocation10 + $0x58] sm:$0xff]
    %v1002 = vld [vmem:[#allocation10 + $0x60] sm:$0xff]
    %v1003 = vld [vmem:[#allocation10 + $0x68] sm:$0xff]
    %v1004 = vld [vmem:[#allocation10 + $0x70] sm:$0xff]
    %v1005 = vld [vmem:[#allocation10 + $0x78] sm:$0xff]
    %1006 = vmatprep.subr.mxu0 0.0
    %1007 = vmatpush1.msra.mxu0 %v1005
    %1008 = vmatprep.subr.mxu0 0.0
    %1009 = vmatpush1.msra.mxu0 %v1004
    %1010 = vmatprep.subr.mxu0 0.0
    %1011 = vmatpush1.msra.mxu0 %v1003
    %1012 = vmatprep.subr.mxu0 0.0
    %1013 = vmatpush1.msra.mxu0 %v1002
    %1014 = vmatprep.subr.mxu0 0.0
    %1015 = vmatpush1.msra.mxu0 %v1001
    %1016 = vmatprep.subr.mxu0 0.0
    %1017 = vmatpush1.msra.mxu0 %v1000
    %1018 = vmatprep.subr.mxu0 0.0
    %1019 = vmatpush1.msra.mxu0 %v999
    %1020 = vmatprep.subr.mxu0 0.0
    %1021 = vmatpush1.msra.mxu0 %v998
    %1022 = vmatprep.subr.mxu0 0.0
    %1023 = vmatpush1.msra.mxu0 %v997
    %1024 = vmatprep.subr.mxu0 0.0
    %1025 = vmatpush1.msra.mxu0 %v996
    %1026 = vmatprep.subr.mxu0 0.0
    %1027 = vmatpush1.msra.mxu0 %v995
    %1028 = vmatprep.subr.mxu0 0.0
    %1029 = vmatpush1.msra.mxu0 %v994
    %1030 = vmatprep.subr.mxu0 0.0
    %1031 = vmatpush1.msra.mxu0 %v993
    %1032 = vmatprep.subr.mxu0 0.0
    %1033 = vmatpush1.msra.mxu0 %v992
    %1034 = vmatprep.subr.mxu0 0.0
    %1035 = vmatpush1.msra.mxu0 %v991
    %1036 = vmatprep.subr.mxu0 0.0
    %1037 = vmatpush1.msra.mxu0 %v990
    %1038 = vmatprep.subr.mxu0 0.0
    %1039 = vmatpush2.msra.mxu0 0.0
    %1040 = vmatprep.subr.mxu0 0.0
    %1041 = vmatpush2.msra.mxu0 0.0
    %1042 = vmatprep.subr.mxu0 0.0
    %1043 = vmatpush2.msra.mxu0 0.0
    %1044 = vmatprep.subr.mxu0 0.0
    %1045 = vmatpush2.msra.mxu0 0.0
    %1046 = vmatprep.subr.mxu0 0.0
    %1047 = vmatpush2.msra.mxu0 0.0
    %1048 = vmatprep.subr.mxu0 0.0
    %1049 = vmatpush2.msra.mxu0 0.0
    %1050 = vmatprep.subr.mxu0 0.0
    %1051 = vmatpush2.msra.mxu0 0.0
    %1052 = vmatprep.subr.mxu0 0.0
    %1053 = vmatpush2.msra.mxu0 0.0
    %1054 = vmatprep.subr.mxu0 0.0
    %1055 = vmatpush2.msra.mxu0 0.0
    %1056 = vmatprep.subr.mxu0 0.0
    %1057 = vmatpush2.msra.mxu0 0.0
    %1058 = vmatprep.subr.mxu0 0.0
    %1059 = vmatpush2.msra.mxu0 0.0
    %1060 = vmatprep.subr.mxu0 0.0
    %1061 = vmatpush2.msra.mxu0 0.0
    %1062 = vmatprep.subr.mxu0 0.0
    %1063 = vmatpush2.msra.mxu0 0.0
    %1064 = vmatprep.subr.mxu0 0.0
    %1065 = vmatpush2.msra.mxu0 0.0
    %1066 = vmatprep.subr.mxu0 0.0
    %1067 = vmatpush2.msra.mxu0 0.0
    %1068 = vmatprep.subr.mxu0 0.0
    %1069 = vmatpush2.msra.mxu0 0.0
    %1070 = vmatprep.mubr.f32.mxu0 0.0
    %1071 = vmatmul.mubr.f32.gmra.mxu0 %v989
    %v1072 = vpop.f32.mrf.mxu0
    %v1073 = vadd.f32 0.0, %v1072
    %v1074 = vpop.f32.mrf.mxu0
    %1075 = vdwg.mxu0
    %v1076 = vmul.f32 %v1073, %v529
    %v1077 = vlaneseq
    %v1078 = vshrl.u32 %v1077, 7
    %v1079 = vsub.s32 0, %v1078
    %v1080 = vrot.slane %v1076, %v1079
    %v1081 = vsub.f32 %v977, %v1080
    %v1082 = vsub.f32 %v978, %v1080
    %v1083 = vsub.f32 %v979, %v1080
    %v1084 = vsub.f32 %v980, %v1080
    %v1085 = vmul.f32 %v1081, %v1081
    %v1086 = vmul.f32 %v1082, %v1082
    %v1087 = vmul.f32 %v1083, %v1083
    %v1088 = vmul.f32 %v1084, %v1084
    %v1089 = vadd.f32 %v1085, %v1086
    %v1090 = vadd.f32 %v1089, %v1087
    %v1091 = vadd.f32 %v1090, %v1088
    %v1092 = vrot.slane %v1091, 4
    %v1093 = vadd.f32 %v1091, %v1092
    %v1094 = vrot.slane %v1093, 2
    %v1095 = vadd.f32 %v1093, %v1094
    %v1096 = vrot.slane %v1095, 1
    %v1097 = vadd.f32 %v1095, %v1096
    %1098 = vmatprep.subr.mxu0 0.0
    %1099 = vmatpush1.msra.mxu0 %v1005
    %1100 = vmatprep.subr.mxu0 0.0
    %1101 = vmatpush1.msra.mxu0 %v1004
    %1102 = vmatprep.subr.mxu0 0.0
    %1103 = vmatpush1.msra.mxu0 %v1003
    %1104 = vmatprep.subr.mxu0 0.0
    %1105 = vmatpush1.msra.mxu0 %v1002
    %1106 = vmatprep.subr.mxu0 0.0
    %1107 = vmatpush1.msra.mxu0 %v1001
    %1108 = vmatprep.subr.mxu0 0.0
    %1109 = vmatpush1.msra.mxu0 %v1000
    %1110 = vmatprep.subr.mxu0 0.0
    %1111 = vmatpush1.msra.mxu0 %v999
    %1112 = vmatprep.subr.mxu0 0.0
    %1113 = vmatpush1.msra.mxu0 %v998
    %1114 = vmatprep.subr.mxu0 0.0
    %1115 = vmatpush1.msra.mxu0 %v997
    %1116 = vmatprep.subr.mxu0 0.0
    %1117 = vmatpush1.msra.mxu0 %v996
    %1118 = vmatprep.subr.mxu0 0.0
    %1119 = vmatpush1.msra.mxu0 %v995
    %1120 = vmatprep.subr.mxu0 0.0
    %1121 = vmatpush1.msra.mxu0 %v994
    %1122 = vmatprep.subr.mxu0 0.0
    %1123 = vmatpush1.msra.mxu0 %v993
    %1124 = vmatprep.subr.mxu0 0.0
    %1125 = vmatpush1.msra.mxu0 %v992
    %1126 = vmatprep.subr.mxu0 0.0
    %1127 = vmatpush1.msra.mxu0 %v991
    %1128 = vmatprep.subr.mxu0 0.0
    %1129 = vmatpush1.msra.mxu0 %v990
    %1130 = vmatprep.subr.mxu0 0.0
    %1131 = vmatpush2.msra.mxu0 0.0
    %1132 = vmatprep.subr.mxu0 0.0
    %1133 = vmatpush2.msra.mxu0 0.0
    %1134 = vmatprep.subr.mxu0 0.0
    %1135 = vmatpush2.msra.mxu0 0.0
    %1136 = vmatprep.subr.mxu0 0.0
    %1137 = vmatpush2.msra.mxu0 0.0
    %1138 = vmatprep.subr.mxu0 0.0
    %1139 = vmatpush2.msra.mxu0 0.0
    %1140 = vmatprep.subr.mxu0 0.0
    %1141 = vmatpush2.msra.mxu0 0.0
    %1142 = vmatprep.subr.mxu0 0.0
    %1143 = vmatpush2.msra.mxu0 0.0
    %1144 = vmatprep.subr.mxu0 0.0
    %1145 = vmatpush2.msra.mxu0 0.0
    %1146 = vmatprep.subr.mxu0 0.0
    %1147 = vmatpush2.msra.mxu0 0.0
    %1148 = vmatprep.subr.mxu0 0.0
    %1149 = vmatpush2.msra.mxu0 0.0
    %1150 = vmatprep.subr.mxu0 0.0
    %1151 = vmatpush2.msra.mxu0 0.0
    %1152 = vmatprep.subr.mxu0 0.0
    %1153 = vmatpush2.msra.mxu0 0.0
    %1154 = vmatprep.subr.mxu0 0.0
    %1155 = vmatpush2.msra.mxu0 0.0
    %1156 = vmatprep.subr.mxu0 0.0
    %1157 = vmatpush2.msra.mxu0 0.0
    %1158 = vmatprep.subr.mxu0 0.0
    %1159 = vmatpush2.msra.mxu0 0.0
    %1160 = vmatprep.subr.mxu0 0.0
    %1161 = vmatpush2.msra.mxu0 0.0
    %1162 = vmatprep.mubr.f32.mxu0 0.0
    %1163 = vmatmul.mubr.f32.gmra.mxu0 %v1097
    %v1164 = vpop.f32.mrf.mxu0
    %v1165 = vadd.f32 0.0, %v1164
    %v1166 = vpop.f32.mrf.mxu0
    %1167 = vdwg.mxu0
    %v1168 = vmul.f32 %v1165, %v529
    %v1169 = vadd.f32 %v1168, 1e-05
    %v1170 = vrsqrt.pop %v1169
    %v1171 = vmul.f32 %v658, %v1170
    %v1173 = vlaneseq
    %v1174 = vshrl.u32 %v1173, 7
    %v1175 = vsub.s32 0, %v1174
    %v1176 = vrot.slane %v1171, %v1175
    %v1178 = vmul.f32 %v1081, %v1176
    %v1179 = vmul.f32 %v1082, %v1176
    %v1180 = vmul.f32 %v1083, %v1176
    %v1181 = vmul.f32 %v1084, %v1176
    %v1183 = vlaneseq
    %v1184 = vshrl.u32 %v1183, 7
    %v1185 = vsub.s32 0, %v1184
    %v1186 = vrot.slane %v659, %v1185
    %v1188 = vadd.f32 %v1178, %v1186
    %v1189 = vadd.f32 %v1179, %v1186
    %v1190 = vadd.f32 %v1180, %v1186
    %v1191 = vadd.f32 %v1181, %v1186
    %v1192 = vmax.f32 %v1188, 0.0
    %v1193 = vmax.f32 %v1189, 0.0
    %v1194 = vmax.f32 %v1190, 0.0
    %v1195 = vmax.f32 %v1191, 0.0
    %1196 = vst [vmem:[#allocation12] sm:$0xff] %v1192
    %1197 = vst [vmem:[#allocation12 + $0x8] sm:$0xff] %v1193
    %1198 = vst [vmem:[#allocation12 + $0x10] sm:$0xff] %v1194
    %1199 = vst [vmem:[#allocation12 + $0x18] sm:$0xff] %v1195
    // Predicated region
    $region50: #{tpu_custom_call.1} parent=1 // pred_check
      _
    $region51: #{tpu_custom_call.1} parent=1 // pred_check_branch
      %1201 = sbr.rel (0) target = $region53
    $region52: #{tpu_custom_call.1} parent=1 // pred_region
      %s1203 = ssub.s32 512, 512
      %1204 = vsyncadd [#allocation6], %s1203
      %s1205 = sshll.u32 [#allocation12], 4
      %s1206 = int_to_ptr.vmem [resolvable:$true] %s1205
      %1211 = dma.vmem_to_hbm [thread:$0]  %s1206, 512, %s8, [#allocation6], 128, 128, 8
    $region53: #{tpu_custom_call.1} parent=1 // pred_fallthru
      _
    // Predicated region
    $region54: #{tpu_custom_call.1} parent=1 // pred_check
      _
    $region55: #{tpu_custom_call.1} parent=1 // pred_check_branch
      %1213 = sbr.rel (0) target = $region57
    $region56: #{tpu_custom_call.1} parent=1 // pred_region
      %1214 = dma.done [#allocation6], 512
    $region57: #{tpu_custom_call.1} parent=1 // pred_fallthru
      _
    %1215 = vsyncpa [#allocation5], 1
    %1216 = vsyncpa [#allocation8], 1
    %1217 = vsyncpa [#allocation11], 1
    %1218 = vsyncpa [#allocation6], 1

</llo_original>
